<compile_context>
chip_gen: v6e
topology: v6e:2x2x1
jax: 0.10.0
libtpu: 0.0.40
codegen_flags: <defaults>
</compile_context>

<pallas_src>
import functools

import jax
import jax.numpy as jnp
from jax.experimental import pallas as pl
from jax.experimental.pallas import tpu as pltpu


# --------------------------------------------------------------------------
# Pallas kernel 1: 3x3 conv (padding=1, stride=1) + optional fused ReLU
# Activations: (N, H, C, W) bf16; weights: (Cout, 9*Cin) bf16; bias: (Cout, 1) f32.
# --------------------------------------------------------------------------
def _make_conv_kernel(cout, wd, th, fuse_relu):
    def kernel(x_ref, w_ref, b_ref, o_ref):
        # x_ref: (H+2, Cin, W+2) full padded image (resident across row tiles)
        # w_ref: (Cout, 9*Cin) bf16; b_ref: (Cout, 1) f32
        # o_ref: (TH, Cout, W) bf16 current output row tile
        y0 = pl.multiple_of(pl.program_id(1) * th, th)
        wmat = w_ref[...]                                    # hoisted (Cout, 9*Cin)
        bias = jnp.broadcast_to(b_ref[...], (cout, wd))      # hoisted lane broadcast
        # Rolling halo window: each padded row loaded from VMEM once per tile.
        rows = [x_ref[y0 + j].astype(jnp.float32) for j in range(th + 2)]
        for y in range(th):
            # im2col: single (9*Cin, W) slab -> one MXU dot with K = 9*Cin.
            slab = jnp.concatenate(
                [rows[y + dy][:, dx:dx + wd] for dy in range(3) for dx in range(3)],
                axis=0).astype(jnp.bfloat16)
            acc = jnp.dot(wmat, slab, preferred_element_type=jnp.float32) + bias
            if fuse_relu:
                acc = jnp.maximum(acc, 0.0)
            o_ref[y] = acc.astype(o_ref.dtype)

    return kernel


@functools.partial(jax.jit, static_argnames=("fuse_relu",))
def conv3x3(x, w, b, *, fuse_relu=False):
    """x: (N, H, Cin, W), w: (Cout, Cin, 3, 3), b: (Cout,) -> (N, H, Cout, W) bf16."""
    n, h, cin, wd = x.shape
    cout = w.shape[0]
    th = next(t for t in (16, 8, 7, 4, 2, 1) if h % t == 0)

    # Pad Cin to a multiple of 8 (zero channels + zero weights) so slab assembly is
    # (8,128)-aligned; only the RGB input layer actually gets padded.
    cin_p = -(-cin // 8) * 8
    xp = jnp.pad(x.astype(jnp.bfloat16),
                 ((0, 0), (1, 1), (0, cin_p - cin), (1, 1)))
    wq = w.astype(jnp.bfloat16)
    if cin_p != cin:
        wq = jnp.pad(wq, ((0, 0), (0, cin_p - cin), (0, 0), (0, 0)))
    # (Cout, ky, kx, Cin) -> (Cout, 9*Cin): matches slab stacking order (dy, dx, c).
    wk = jnp.transpose(wq, (0, 2, 3, 1)).reshape(cout, 9 * cin_p)
    bk = b.astype(jnp.float32).reshape(cout, 1)

    # VMEM budget from the actual block shapes (double-buffered worst case).
    img_bytes = (h + 2) * cin_p * (wd + 2) * 2
    out_bytes = th * cout * wd * 2
    wgt_bytes = cout * 9 * cin_p * 2 + cout * 4
    need = 2 * (img_bytes + out_bytes + wgt_bytes)
    vmem_limit = int(min(max(2 * need, 16 * 2**20), 48 * 2**20))

    kernel = _make_conv_kernel(cout, wd, th, fuse_relu)
    return pl.pallas_call(
        kernel,
        out_shape=jax.ShapeDtypeStruct((n, h, cout, wd), jnp.bfloat16),
        grid_spec=pltpu.PrefetchScalarGridSpec(
            num_scalar_prefetch=0,
            grid=(n, h // th),
            in_specs=[
                # full padded image, re-used (not re-DMAed) across the row-tile axis
                pl.BlockSpec((None, h + 2, cin_p, wd + 2), lambda i, r: (i, 0, 0, 0)),
                pl.BlockSpec((cout, 9 * cin_p), lambda i, r: (0, 0)),
                pl.BlockSpec((cout, 1), lambda i, r: (0, 0)),
            ],
            out_specs=pl.BlockSpec((None, th, cout, wd), lambda i, r: (i, r, 0, 0)),
        ),
        compiler_params=pltpu.CompilerParams(
            dimension_semantics=("parallel", "arbitrary"),
            vmem_limit_bytes=vmem_limit),
    )(xp, wk, bk)


# --------------------------------------------------------------------------
# Pallas kernel 2: mean |f[:B] - f[B:]| directly on the batched feature tensor
# (no slicing / flatten / pad copies); bf16 reads, f32 VMEM partial accumulator.
# --------------------------------------------------------------------------
def _absdiff_mean_kernel(a_ref, b_ref, o_ref, acc_ref):
    first = (pl.program_id(0) == 0) & (pl.program_id(1) == 0)
    last = ((pl.program_id(0) == pl.num_programs(0) - 1) &
            (pl.program_id(1) == pl.num_programs(1) - 1))

    @pl.when(first)
    def _():
        acc_ref[...] = jnp.zeros_like(acc_ref)

    d = jnp.abs(a_ref[...].astype(jnp.float32) - b_ref[...].astype(jnp.float32))
    acc_ref[...] += d.sum(axis=0)          # (C, W) per-lane partials (independent adds)

    @pl.when(last)
    def _():
        o_ref[0, 0] = jnp.sum(acc_ref[...])   # single cross-lane reduce at the end


def _pick_bh(h, c, w, itemsize, budget=1 << 19):
    for bh in range(h, 0, -1):
        if h % bh == 0 and bh * c * w * itemsize <= budget:
            return bh
    return 1


@jax.jit
def half_l1_mean(f):
    """f: (2B, H, C, W); returns mean(|f[:B] - f[B:]|) as an f32 scalar."""
    n2, h, c, w = f.shape
    n = n2 // 2
    bh = _pick_bh(h, c, w, jnp.dtype(f.dtype).itemsize)

    s = pl.pallas_call(
        _absdiff_mean_kernel,
        out_shape=jax.ShapeDtypeStruct((1, 1), jnp.float32),
        grid_spec=pltpu.PrefetchScalarGridSpec(
            num_scalar_prefetch=0,
            grid=(n, h // bh),
            in_specs=[
                # same array passed twice; the two halves are selected by index_map
                pl.BlockSpec((None, bh, c, w), lambda i, r: (i, r, 0, 0)),
                pl.BlockSpec((None, bh, c, w), lambda i, r: (i + n, r, 0, 0)),
            ],
            out_specs=pl.BlockSpec((1, 1), lambda i, r: (0, 0),
                                   memory_space=pltpu.MemorySpace.SMEM),
            scratch_shapes=[pltpu.VMEM((c, w), jnp.float32)],
        ),
        compiler_params=pltpu.CompilerParams(
            dimension_semantics=("arbitrary", "arbitrary")),
    )(f, f)
    return s[0, 0] / jnp.float32(n * h * c * w)


# --------------------------------------------------------------------------
# Plain-JAX glue: nearest interpolation, maxpool (cheap, non-hot-path)
# --------------------------------------------------------------------------
def nearest_resize(x, size):
    # matches F.interpolate(mode='nearest'): src = floor(dst * in / out); x is NCHW
    _, _, h, w = x.shape
    oh, ow = size
    hi = (jnp.arange(oh) * h) // oh
    wi = (jnp.arange(ow) * w) // ow
    return x[:, :, hi, :][:, :, :, wi]


def maxpool2(x):
    # x: (N, H, C, W)
    n, h, c, w = x.shape
    return x.reshape(n, h // 2, 2, c, w // 2, 2).max(axis=(2, 5))


# --------------------------------------------------------------------------
# Synthetic VGG16-features clone (layers 0..17), reduced channel widths
# --------------------------------------------------------------------------
class SyntheticVGGFeatures:
    # (kind, cin, cout) mirroring torchvision vgg16.features indices 0..17
    _C1, _C2, _C3, _C4 = 8, 8, 8, 16          # multiples of 8 (sublane-aligned)
    CFG = [
        ("conv", 3, _C1), ("relu",), ("conv", _C1, _C1), ("relu",), ("pool",),
        ("conv", _C1, _C2), ("relu",), ("conv", _C2, _C2), ("relu",), ("pool",),
        ("conv", _C2, _C3), ("relu",), ("conv", _C3, _C3), ("relu",),
        ("conv", _C3, _C3), ("relu",), ("pool",),
        ("conv", _C3, _C4),
    ]

    def __init__(self, key):
        self.params = []
        for layer in self.CFG:
            if layer[0] == "conv":
                cin, cout = layer[1], layer[2]
                key, kw, kb = jax.random.split(key, 3)
                w = jax.random.normal(kw, (cout, cin, 3, 3), jnp.float32)
                w = w * jnp.sqrt(2.0 / (cin * 9))
                b = jax.random.normal(kb, (cout,), jnp.float32) * 0.01
                self.params.append((w, b))
            else:
                self.params.append(None)

    def __call__(self, x, layers):
        """x: (N, H, C, W).  Returns taps at `layers`, fusing ReLU into conv where safe."""
        layers = set(layers)
        feats = []
        i, ncfg = 0, len(self.CFG)
        while i < ncfg:
            kind = self.CFG[i][0]
            if kind == "conv":
                w, b = self.params[i]
                fuse = (i + 1 < ncfg and self.CFG[i + 1][0] == "relu"
                        and i not in layers)
                x = conv3x3(x, w, b, fuse_relu=fuse)
                if i in layers:
                    feats.append(x)
                if fuse:
                    i += 1                      # the relu was fused into the conv
                    if i in layers:
                        feats.append(x)
            elif kind == "relu":
                x = jnp.maximum(x, 0.0)
                if i in layers:
                    feats.append(x)
            else:  # pool
                x = maxpool2(x)
                if i in layers:
                    feats.append(x)
            i += 1
        return feats


# --------------------------------------------------------------------------
# PerceptualLoss forward (matches the PyTorch module semantics)
# --------------------------------------------------------------------------
class PerceptualLossPallas:
    def __init__(self, weight=1, layers=(0, 9, 13, 17), feat_extractors=None):
        self.weight = weight
        self.layers = tuple(layers)
        self.feat_extractors = feat_extractors

    def __call__(self, imgs, recon_imgs):
        imgs = nearest_resize(imgs, (224, 224))
        recon_imgs = nearest_resize(recon_imgs, (224, 224))
        # run both image sets through the extractor in one batched pass
        both = jnp.concatenate([imgs, recon_imgs], axis=0)      # (2N, 3, 224, 224)
        both = jnp.transpose(both, (0, 2, 1, 3))                # NCHW -> (N, H, C, W)
        feats = self.feat_extractors(both, self.layers)
        loss = jnp.float32(0.0)
        for f in feats:
            loss = loss + half_l1_mean(f)
        return self.weight * loss


if __name__ == "__main__":
    key = jax.random.PRNGKey(0)
    k_img, k_rec, k_params = jax.random.split(key, 3)

    imgs = jax.random.normal(k_img, (2, 3, 16, 16), jnp.float32)
    recon_imgs = jax.random.normal(k_rec, (2, 3, 16, 16), jnp.float32)

    extractor = SyntheticVGGFeatures(k_params)
    loss_mod = PerceptualLossPallas(weight=1, layers=[0, 9, 13, 17],
                                    feat_extractors=extractor)

    loss_fn = jax.jit(loss_mod.__call__)
    loss = jax.block_until_ready(loss_fn(imgs, recon_imgs))
    assert jnp.isfinite(loss)
    print("KERNEL_OK")
</pallas_src>

<mosaic_0001>
module attributes {stable_mosaic.version = 11 : i64} {
  func.func @kernel(%arg0: i32, %arg1: i32, %arg2: memref<1x226x8x226xbf16, #tpu.memory_space<vmem>>, %arg3: memref<8x72xbf16, #tpu.memory_space<vmem>>, %arg4: memref<8x1xf32, #tpu.memory_space<vmem>>, %arg5: memref<1x16x8x224xbf16, #tpu.memory_space<vmem>>) attributes {dimension_semantics = [#tpu.dimension_semantics<parallel>, #tpu.dimension_semantics<arbitrary>], iteration_bounds = array<i64: 4, 14>, scalar_prefetch = 0 : i64, scratch_operands = 0 : i64, tpu.core_type = #tpu.core_type<tc>, window_params = [{transform_indices = @transform_0, window_bounds = array<i64: 1, 226, 8, 226>}, {pipeline_mode = #tpu.pipeline_mode<synchronous>, transform_indices = @transform_1, window_bounds = array<i64: 8, 72>}, {pipeline_mode = #tpu.pipeline_mode<synchronous>, transform_indices = @transform_2, window_bounds = array<i64: 8, 1>}, {transform_indices = @transform_3, window_bounds = array<i64: 1, 16, 8, 224>}]} {
    %c16_i32 = arith.constant 16 : i32
    %0 = arith.muli %arg1, %c16_i32 : i32
    %1 = tpu.assume_multiple %0, 16 : i32
    %c0 = arith.constant 0 : index
    %c0_0 = arith.constant 0 : index
    %2 = vector.load %arg3[%c0, %c0_0] : memref<8x72xbf16, #tpu.memory_space<vmem>>, vector<8x72xbf16>
    %c0_1 = arith.constant 0 : index
    %c0_2 = arith.constant 0 : index
    %3 = vector.load %arg4[%c0_1, %c0_2] : memref<8x1xf32, #tpu.memory_space<vmem>>, vector<8x1xf32>
    %4 = vector.shape_cast %3 : vector<8x1xf32> to vector<8x1xf32>
    %5 = vector.broadcast %4 : vector<8x1xf32> to vector<8x224xf32>
    %c0_i32 = arith.constant 0 : i32
    %6 = arith.addi %1, %c0_i32 : i32
    %c0_3 = arith.constant 0 : index
    %7 = arith.index_cast %6 : i32 to index
    %c0_4 = arith.constant 0 : index
    %c0_5 = arith.constant 0 : index
    %8 = vector.load %arg2[%c0_3, %7, %c0_4, %c0_5] : memref<1x226x8x226xbf16, #tpu.memory_space<vmem>>, vector<1x1x8x226xbf16>
    %9 = vector.shape_cast %8 : vector<1x1x8x226xbf16> to vector<8x226xbf16>
    %10 = arith.extf %9 : vector<8x226xbf16> to vector<8x226xf32>
    %c1_i32 = arith.constant 1 : i32
    %11 = arith.addi %1, %c1_i32 : i32
    %c0_6 = arith.constant 0 : index
    %12 = arith.index_cast %11 : i32 to index
    %c0_7 = arith.constant 0 : index
    %c0_8 = arith.constant 0 : index
    %13 = vector.load %arg2[%c0_6, %12, %c0_7, %c0_8] : memref<1x226x8x226xbf16, #tpu.memory_space<vmem>>, vector<1x1x8x226xbf16>
    %14 = vector.shape_cast %13 : vector<1x1x8x226xbf16> to vector<8x226xbf16>
    %15 = arith.extf %14 : vector<8x226xbf16> to vector<8x226xf32>
    %c2_i32 = arith.constant 2 : i32
    %16 = arith.addi %1, %c2_i32 : i32
    %c0_9 = arith.constant 0 : index
    %17 = arith.index_cast %16 : i32 to index
    %c0_10 = arith.constant 0 : index
    %c0_11 = arith.constant 0 : index
    %18 = vector.load %arg2[%c0_9, %17, %c0_10, %c0_11] : memref<1x226x8x226xbf16, #tpu.memory_space<vmem>>, vector<1x1x8x226xbf16>
    %19 = vector.shape_cast %18 : vector<1x1x8x226xbf16> to vector<8x226xbf16>
    %20 = arith.extf %19 : vector<8x226xbf16> to vector<8x226xf32>
    %c3_i32 = arith.constant 3 : i32
    %21 = arith.addi %1, %c3_i32 : i32
    %c0_12 = arith.constant 0 : index
    %22 = arith.index_cast %21 : i32 to index
    %c0_13 = arith.constant 0 : index
    %c0_14 = arith.constant 0 : index
    %23 = vector.load %arg2[%c0_12, %22, %c0_13, %c0_14] : memref<1x226x8x226xbf16, #tpu.memory_space<vmem>>, vector<1x1x8x226xbf16>
    %24 = vector.shape_cast %23 : vector<1x1x8x226xbf16> to vector<8x226xbf16>
    %25 = arith.extf %24 : vector<8x226xbf16> to vector<8x226xf32>
    %c4_i32 = arith.constant 4 : i32
    %26 = arith.addi %1, %c4_i32 : i32
    %c0_15 = arith.constant 0 : index
    %27 = arith.index_cast %26 : i32 to index
    %c0_16 = arith.constant 0 : index
    %c0_17 = arith.constant 0 : index
    %28 = vector.load %arg2[%c0_15, %27, %c0_16, %c0_17] : memref<1x226x8x226xbf16, #tpu.memory_space<vmem>>, vector<1x1x8x226xbf16>
    %29 = vector.shape_cast %28 : vector<1x1x8x226xbf16> to vector<8x226xbf16>
    %30 = arith.extf %29 : vector<8x226xbf16> to vector<8x226xf32>
    %c5_i32 = arith.constant 5 : i32
    %31 = arith.addi %1, %c5_i32 : i32
    %c0_18 = arith.constant 0 : index
    %32 = arith.index_cast %31 : i32 to index
    %c0_19 = arith.constant 0 : index
    %c0_20 = arith.constant 0 : index
    %33 = vector.load %arg2[%c0_18, %32, %c0_19, %c0_20] : memref<1x226x8x226xbf16, #tpu.memory_space<vmem>>, vector<1x1x8x226xbf16>
    %34 = vector.shape_cast %33 : vector<1x1x8x226xbf16> to vector<8x226xbf16>
    %35 = arith.extf %34 : vector<8x226xbf16> to vector<8x226xf32>
    %c6_i32 = arith.constant 6 : i32
    %36 = arith.addi %1, %c6_i32 : i32
    %c0_21 = arith.constant 0 : index
    %37 = arith.index_cast %36 : i32 to index
    %c0_22 = arith.constant 0 : index
    %c0_23 = arith.constant 0 : index
    %38 = vector.load %arg2[%c0_21, %37, %c0_22, %c0_23] : memref<1x226x8x226xbf16, #tpu.memory_space<vmem>>, vector<1x1x8x226xbf16>
    %39 = vector.shape_cast %38 : vector<1x1x8x226xbf16> to vector<8x226xbf16>
    %40 = arith.extf %39 : vector<8x226xbf16> to vector<8x226xf32>
    %c7_i32 = arith.constant 7 : i32
    %41 = arith.addi %1, %c7_i32 : i32
    %c0_24 = arith.constant 0 : index
    %42 = arith.index_cast %41 : i32 to index
    %c0_25 = arith.constant 0 : index
    %c0_26 = arith.constant 0 : index
    %43 = vector.load %arg2[%c0_24, %42, %c0_25, %c0_26] : memref<1x226x8x226xbf16, #tpu.memory_space<vmem>>, vector<1x1x8x226xbf16>
    %44 = vector.shape_cast %43 : vector<1x1x8x226xbf16> to vector<8x226xbf16>
    %45 = arith.extf %44 : vector<8x226xbf16> to vector<8x226xf32>
    %c8_i32 = arith.constant 8 : i32
    %46 = arith.addi %1, %c8_i32 : i32
    %c0_27 = arith.constant 0 : index
    %47 = arith.index_cast %46 : i32 to index
    %c0_28 = arith.constant 0 : index
    %c0_29 = arith.constant 0 : index
    %48 = vector.load %arg2[%c0_27, %47, %c0_28, %c0_29] : memref<1x226x8x226xbf16, #tpu.memory_space<vmem>>, vector<1x1x8x226xbf16>
    %49 = vector.shape_cast %48 : vector<1x1x8x226xbf16> to vector<8x226xbf16>
    %50 = arith.extf %49 : vector<8x226xbf16> to vector<8x226xf32>
    %c9_i32 = arith.constant 9 : i32
    %51 = arith.addi %1, %c9_i32 : i32
    %c0_30 = arith.constant 0 : index
    %52 = arith.index_cast %51 : i32 to index
    %c0_31 = arith.constant 0 : index
    %c0_32 = arith.constant 0 : index
    %53 = vector.load %arg2[%c0_30, %52, %c0_31, %c0_32] : memref<1x226x8x226xbf16, #tpu.memory_space<vmem>>, vector<1x1x8x226xbf16>
    %54 = vector.shape_cast %53 : vector<1x1x8x226xbf16> to vector<8x226xbf16>
    %55 = arith.extf %54 : vector<8x226xbf16> to vector<8x226xf32>
    %c10_i32 = arith.constant 10 : i32
    %56 = arith.addi %1, %c10_i32 : i32
    %c0_33 = arith.constant 0 : index
    %57 = arith.index_cast %56 : i32 to index
    %c0_34 = arith.constant 0 : index
    %c0_35 = arith.constant 0 : index
    %58 = vector.load %arg2[%c0_33, %57, %c0_34, %c0_35] : memref<1x226x8x226xbf16, #tpu.memory_space<vmem>>, vector<1x1x8x226xbf16>
    %59 = vector.shape_cast %58 : vector<1x1x8x226xbf16> to vector<8x226xbf16>
    %60 = arith.extf %59 : vector<8x226xbf16> to vector<8x226xf32>
    %c11_i32 = arith.constant 11 : i32
    %61 = arith.addi %1, %c11_i32 : i32
    %c0_36 = arith.constant 0 : index
    %62 = arith.index_cast %61 : i32 to index
    %c0_37 = arith.constant 0 : index
    %c0_38 = arith.constant 0 : index
    %63 = vector.load %arg2[%c0_36, %62, %c0_37, %c0_38] : memref<1x226x8x226xbf16, #tpu.memory_space<vmem>>, vector<1x1x8x226xbf16>
    %64 = vector.shape_cast %63 : vector<1x1x8x226xbf16> to vector<8x226xbf16>
    %65 = arith.extf %64 : vector<8x226xbf16> to vector<8x226xf32>
    %c12_i32 = arith.constant 12 : i32
    %66 = arith.addi %1, %c12_i32 : i32
    %c0_39 = arith.constant 0 : index
    %67 = arith.index_cast %66 : i32 to index
    %c0_40 = arith.constant 0 : index
    %c0_41 = arith.constant 0 : index
    %68 = vector.load %arg2[%c0_39, %67, %c0_40, %c0_41] : memref<1x226x8x226xbf16, #tpu.memory_space<vmem>>, vector<1x1x8x226xbf16>
    %69 = vector.shape_cast %68 : vector<1x1x8x226xbf16> to vector<8x226xbf16>
    %70 = arith.extf %69 : vector<8x226xbf16> to vector<8x226xf32>
    %c13_i32 = arith.constant 13 : i32
    %71 = arith.addi %1, %c13_i32 : i32
    %c0_42 = arith.constant 0 : index
    %72 = arith.index_cast %71 : i32 to index
    %c0_43 = arith.constant 0 : index
    %c0_44 = arith.constant 0 : index
    %73 = vector.load %arg2[%c0_42, %72, %c0_43, %c0_44] : memref<1x226x8x226xbf16, #tpu.memory_space<vmem>>, vector<1x1x8x226xbf16>
    %74 = vector.shape_cast %73 : vector<1x1x8x226xbf16> to vector<8x226xbf16>
    %75 = arith.extf %74 : vector<8x226xbf16> to vector<8x226xf32>
    %c14_i32 = arith.constant 14 : i32
    %76 = arith.addi %1, %c14_i32 : i32
    %c0_45 = arith.constant 0 : index
    %77 = arith.index_cast %76 : i32 to index
    %c0_46 = arith.constant 0 : index
    %c0_47 = arith.constant 0 : index
    %78 = vector.load %arg2[%c0_45, %77, %c0_46, %c0_47] : memref<1x226x8x226xbf16, #tpu.memory_space<vmem>>, vector<1x1x8x226xbf16>
    %79 = vector.shape_cast %78 : vector<1x1x8x226xbf16> to vector<8x226xbf16>
    %80 = arith.extf %79 : vector<8x226xbf16> to vector<8x226xf32>
    %c15_i32 = arith.constant 15 : i32
    %81 = arith.addi %1, %c15_i32 : i32
    %c0_48 = arith.constant 0 : index
    %82 = arith.index_cast %81 : i32 to index
    %c0_49 = arith.constant 0 : index
    %c0_50 = arith.constant 0 : index
    %83 = vector.load %arg2[%c0_48, %82, %c0_49, %c0_50] : memref<1x226x8x226xbf16, #tpu.memory_space<vmem>>, vector<1x1x8x226xbf16>
    %84 = vector.shape_cast %83 : vector<1x1x8x226xbf16> to vector<8x226xbf16>
    %85 = arith.extf %84 : vector<8x226xbf16> to vector<8x226xf32>
    %c16_i32_51 = arith.constant 16 : i32
    %86 = arith.addi %1, %c16_i32_51 : i32
    %c0_52 = arith.constant 0 : index
    %87 = arith.index_cast %86 : i32 to index
    %c0_53 = arith.constant 0 : index
    %c0_54 = arith.constant 0 : index
    %88 = vector.load %arg2[%c0_52, %87, %c0_53, %c0_54] : memref<1x226x8x226xbf16, #tpu.memory_space<vmem>>, vector<1x1x8x226xbf16>
    %89 = vector.shape_cast %88 : vector<1x1x8x226xbf16> to vector<8x226xbf16>
    %90 = arith.extf %89 : vector<8x226xbf16> to vector<8x226xf32>
    %c17_i32 = arith.constant 17 : i32
    %91 = arith.addi %1, %c17_i32 : i32
    %c0_55 = arith.constant 0 : index
    %92 = arith.index_cast %91 : i32 to index
    %c0_56 = arith.constant 0 : index
    %c0_57 = arith.constant 0 : index
    %93 = vector.load %arg2[%c0_55, %92, %c0_56, %c0_57] : memref<1x226x8x226xbf16, #tpu.memory_space<vmem>>, vector<1x1x8x226xbf16>
    %94 = vector.shape_cast %93 : vector<1x1x8x226xbf16> to vector<8x226xbf16>
    %95 = arith.extf %94 : vector<8x226xbf16> to vector<8x226xf32>
    %96 = vector.extract_strided_slice %10 {offsets = [0, 0], sizes = [8, 224], strides = [1, 1]} : vector<8x226xf32> to vector<8x224xf32>
    %97 = vector.extract_strided_slice %10 {offsets = [0, 1], sizes = [8, 224], strides = [1, 1]} : vector<8x226xf32> to vector<8x224xf32>
    %98 = vector.extract_strided_slice %10 {offsets = [0, 2], sizes = [8, 224], strides = [1, 1]} : vector<8x226xf32> to vector<8x224xf32>
    %99 = vector.extract_strided_slice %15 {offsets = [0, 0], sizes = [8, 224], strides = [1, 1]} : vector<8x226xf32> to vector<8x224xf32>
    %100 = vector.extract_strided_slice %15 {offsets = [0, 1], sizes = [8, 224], strides = [1, 1]} : vector<8x226xf32> to vector<8x224xf32>
    %101 = vector.extract_strided_slice %15 {offsets = [0, 2], sizes = [8, 224], strides = [1, 1]} : vector<8x226xf32> to vector<8x224xf32>
    %102 = vector.extract_strided_slice %20 {offsets = [0, 0], sizes = [8, 224], strides = [1, 1]} : vector<8x226xf32> to vector<8x224xf32>
    %103 = vector.extract_strided_slice %20 {offsets = [0, 1], sizes = [8, 224], strides = [1, 1]} : vector<8x226xf32> to vector<8x224xf32>
    %104 = vector.extract_strided_slice %20 {offsets = [0, 2], sizes = [8, 224], strides = [1, 1]} : vector<8x226xf32> to vector<8x224xf32>
    %105 = tpu.concatenate %96, %97, %98, %99, %100, %101, %102, %103, %104 in 0 : vector<8x224xf32>, vector<8x224xf32>, vector<8x224xf32>, vector<8x224xf32>, vector<8x224xf32>, vector<8x224xf32>, vector<8x224xf32>, vector<8x224xf32>, vector<8x224xf32> -> vector<72x224xf32>
    %106 = arith.truncf %105 : vector<72x224xf32> to vector<72x224xbf16>
    %cst = arith.constant dense<0.000000e+00> : vector<8x224xf32>
    %107 = tpu.matmul %2, %106, %cst {dimension_numbers = #tpu.dot_dimension_numbers<[1], [0], [0], [1], [0, 0, 1, 1], [], []>} : vector<8x72xbf16>, vector<72x224xbf16>, vector<8x224xf32> -> vector<8x224xf32>
    %108 = arith.addf %107, %5 : vector<8x224xf32>
    %109 = arith.truncf %108 : vector<8x224xf32> to vector<8x224xbf16>
    %c0_58 = arith.constant 0 : index
    %c0_59 = arith.constant 0 : index
    %c0_60 = arith.constant 0 : index
    %c0_61 = arith.constant 0 : index
    %110 = vector.load %arg5[%c0_58, %c0_59, %c0_60, %c0_61] : memref<1x16x8x224xbf16, #tpu.memory_space<vmem>>, vector<1x1x8x224xbf16>
    %111 = vector.shape_cast %110 : vector<1x1x8x224xbf16> to vector<8x224xbf16>
    %112 = vector.shape_cast %109 : vector<8x224xbf16> to vector<1x1x8x224xbf16>
    tpu.vector_store %arg5[%c0_58, %c0_59, %c0_60, %c0_61], %112 {strides = array<i32>} : memref<1x16x8x224xbf16, #tpu.memory_space<vmem>>, vector<1x1x8x224xbf16>,
    %113 = vector.extract_strided_slice %15 {offsets = [0, 0], sizes = [8, 224], strides = [1, 1]} : vector<8x226xf32> to vector<8x224xf32>
    %114 = vector.extract_strided_slice %15 {offsets = [0, 1], sizes = [8, 224], strides = [1, 1]} : vector<8x226xf32> to vector<8x224xf32>
    %115 = vector.extract_strided_slice %15 {offsets = [0, 2], sizes = [8, 224], strides = [1, 1]} : vector<8x226xf32> to vector<8x224xf32>
    %116 = vector.extract_strided_slice %20 {offsets = [0, 0], sizes = [8, 224], strides = [1, 1]} : vector<8x226xf32> to vector<8x224xf32>
    %117 = vector.extract_strided_slice %20 {offsets = [0, 1], sizes = [8, 224], strides = [1, 1]} : vector<8x226xf32> to vector<8x224xf32>
    %118 = vector.extract_strided_slice %20 {offsets = [0, 2], sizes = [8, 224], strides = [1, 1]} : vector<8x226xf32> to vector<8x224xf32>
    %119 = vector.extract_strided_slice %25 {offsets = [0, 0], sizes = [8, 224], strides = [1, 1]} : vector<8x226xf32> to vector<8x224xf32>
    %120 = vector.extract_strided_slice %25 {offsets = [0, 1], sizes = [8, 224], strides = [1, 1]} : vector<8x226xf32> to vector<8x224xf32>
    %121 = vector.extract_strided_slice %25 {offsets = [0, 2], sizes = [8, 224], strides = [1, 1]} : vector<8x226xf32> to vector<8x224xf32>
    %122 = tpu.concatenate %113, %114, %115, %116, %117, %118, %119, %120, %121 in 0 : vector<8x224xf32>, vector<8x224xf32>, vector<8x224xf32>, vector<8x224xf32>, vector<8x224xf32>, vector<8x224xf32>, vector<8x224xf32>, vector<8x224xf32>, vector<8x224xf32> -> vector<72x224xf32>
    %123 = arith.truncf %122 : vector<72x224xf32> to vector<72x224xbf16>
    %cst_62 = arith.constant dense<0.000000e+00> : vector<8x224xf32>
    %124 = tpu.matmul %2, %123, %cst_62 {dimension_numbers = #tpu.dot_dimension_numbers<[1], [0], [0], [1], [0, 0, 1, 1], [], []>} : vector<8x72xbf16>, vector<72x224xbf16>, vector<8x224xf32> -> vector<8x224xf32>
    %125 = arith.addf %124, %5 : vector<8x224xf32>
    %126 = arith.truncf %125 : vector<8x224xf32> to vector<8x224xbf16>
    %c0_63 = arith.constant 0 : index
    %c1 = arith.constant 1 : index
    %c0_64 = arith.constant 0 : index
    %c0_65 = arith.constant 0 : index
    %127 = vector.load %arg5[%c0_63, %c1, %c0_64, %c0_65] : memref<1x16x8x224xbf16, #tpu.memory_space<vmem>>, vector<1x1x8x224xbf16>
    %128 = vector.shape_cast %127 : vector<1x1x8x224xbf16> to vector<8x224xbf16>
    %129 = vector.shape_cast %126 : vector<8x224xbf16> to vector<1x1x8x224xbf16>
    tpu.vector_store %arg5[%c0_63, %c1, %c0_64, %c0_65], %129 {strides = array<i32>} : memref<1x16x8x224xbf16, #tpu.memory_space<vmem>>, vector<1x1x8x224xbf16>,
    %130 = vector.extract_strided_slice %20 {offsets = [0, 0], sizes = [8, 224], strides = [1, 1]} : vector<8x226xf32> to vector<8x224xf32>
    %131 = vector.extract_strided_slice %20 {offsets = [0, 1], sizes = [8, 224], strides = [1, 1]} : vector<8x226xf32> to vector<8x224xf32>
    %132 = vector.extract_strided_slice %20 {offsets = [0, 2], sizes = [8, 224], strides = [1, 1]} : vector<8x226xf32> to vector<8x224xf32>
    %133 = vector.extract_strided_slice %25 {offsets = [0, 0], sizes = [8, 224], strides = [1, 1]} : vector<8x226xf32> to vector<8x224xf32>
    %134 = vector.extract_strided_slice %25 {offsets = [0, 1], sizes = [8, 224], strides = [1, 1]} : vector<8x226xf32> to vector<8x224xf32>
    %135 = vector.extract_strided_slice %25 {offsets = [0, 2], sizes = [8, 224], strides = [1, 1]} : vector<8x226xf32> to vector<8x224xf32>
    %136 = vector.extract_strided_slice %30 {offsets = [0, 0], sizes = [8, 224], strides = [1, 1]} : vector<8x226xf32> to vector<8x224xf32>
    %137 = vector.extract_strided_slice %30 {offsets = [0, 1], sizes = [8, 224], strides = [1, 1]} : vector<8x226xf32> to vector<8x224xf32>
    %138 = vector.extract_strided_slice %30 {offsets = [0, 2], sizes = [8, 224], strides = [1, 1]} : vector<8x226xf32> to vector<8x224xf32>
    %139 = tpu.concatenate %130, %131, %132, %133, %134, %135, %136, %137, %138 in 0 : vector<8x224xf32>, vector<8x224xf32>, vector<8x224xf32>, vector<8x224xf32>, vector<8x224xf32>, vector<8x224xf32>, vector<8x224xf32>, vector<8x224xf32>, vector<8x224xf32> -> vector<72x224xf32>
    %140 = arith.truncf %139 : vector<72x224xf32> to vector<72x224xbf16>
    %cst_66 = arith.constant dense<0.000000e+00> : vector<8x224xf32>
    %141 = tpu.matmul %2, %140, %cst_66 {dimension_numbers = #tpu.dot_dimension_numbers<[1], [0], [0], [1], [0, 0, 1, 1], [], []>} : vector<8x72xbf16>, vector<72x224xbf16>, vector<8x224xf32> -> vector<8x224xf32>
    %142 = arith.addf %141, %5 : vector<8x224xf32>
    %143 = arith.truncf %142 : vector<8x224xf32> to vector<8x224xbf16>
    %c0_67 = arith.constant 0 : index
    %c2 = arith.constant 2 : index
    %c0_68 = arith.constant 0 : index
    %c0_69 = arith.constant 0 : index
    %144 = vector.load %arg5[%c0_67, %c2, %c0_68, %c0_69] : memref<1x16x8x224xbf16, #tpu.memory_space<vmem>>, vector<1x1x8x224xbf16>
    %145 = vector.shape_cast %144 : vector<1x1x8x224xbf16> to vector<8x224xbf16>
    %146 = vector.shape_cast %143 : vector<8x224xbf16> to vector<1x1x8x224xbf16>
    tpu.vector_store %arg5[%c0_67, %c2, %c0_68, %c0_69], %146 {strides = array<i32>} : memref<1x16x8x224xbf16, #tpu.memory_space<vmem>>, vector<1x1x8x224xbf16>,
    %147 = vector.extract_strided_slice %25 {offsets = [0, 0], sizes = [8, 224], strides = [1, 1]} : vector<8x226xf32> to vector<8x224xf32>
    %148 = vector.extract_strided_slice %25 {offsets = [0, 1], sizes = [8, 224], strides = [1, 1]} : vector<8x226xf32> to vector<8x224xf32>
    %149 = vector.extract_strided_slice %25 {offsets = [0, 2], sizes = [8, 224], strides = [1, 1]} : vector<8x226xf32> to vector<8x224xf32>
    %150 = vector.extract_strided_slice %30 {offsets = [0, 0], sizes = [8, 224], strides = [1, 1]} : vector<8x226xf32> to vector<8x224xf32>
    %151 = vector.extract_strided_slice %30 {offsets = [0, 1], sizes = [8, 224], strides = [1, 1]} : vector<8x226xf32> to vector<8x224xf32>
    %152 = vector.extract_strided_slice %30 {offsets = [0, 2], sizes = [8, 224], strides = [1, 1]} : vector<8x226xf32> to vector<8x224xf32>
    %153 = vector.extract_strided_slice %35 {offsets = [0, 0], sizes = [8, 224], strides = [1, 1]} : vector<8x226xf32> to vector<8x224xf32>
    %154 = vector.extract_strided_slice %35 {offsets = [0, 1], sizes = [8, 224], strides = [1, 1]} : vector<8x226xf32> to vector<8x224xf32>
    %155 = vector.extract_strided_slice %35 {offsets = [0, 2], sizes = [8, 224], strides = [1, 1]} : vector<8x226xf32> to vector<8x224xf32>
    %156 = tpu.concatenate %147, %148, %149, %150, %151, %152, %153, %154, %155 in 0 : vector<8x224xf32>, vector<8x224xf32>, vector<8x224xf32>, vector<8x224xf32>, vector<8x224xf32>, vector<8x224xf32>, vector<8x224xf32>, vector<8x224xf32>, vector<8x224xf32> -> vector<72x224xf32>
    %157 = arith.truncf %156 : vector<72x224xf32> to vector<72x224xbf16>
    %cst_70 = arith.constant dense<0.000000e+00> : vector<8x224xf32>
    %158 = tpu.matmul %2, %157, %cst_70 {dimension_numbers = #tpu.dot_dimension_numbers<[1], [0], [0], [1], [0, 0, 1, 1], [], []>} : vector<8x72xbf16>, vector<72x224xbf16>, vector<8x224xf32> -> vector<8x224xf32>
    %159 = arith.addf %158, %5 : vector<8x224xf32>
    %160 = arith.truncf %159 : vector<8x224xf32> to vector<8x224xbf16>
    %c0_71 = arith.constant 0 : index
    %c3 = arith.constant 3 : index
    %c0_72 = arith.constant 0 : index
    %c0_73 = arith.constant 0 : index
    %161 = vector.load %arg5[%c0_71, %c3, %c0_72, %c0_73] : memref<1x16x8x224xbf16, #tpu.memory_space<vmem>>, vector<1x1x8x224xbf16>
    %162 = vector.shape_cast %161 : vector<1x1x8x224xbf16> to vector<8x224xbf16>
    %163 = vector.shape_cast %160 : vector<8x224xbf16> to vector<1x1x8x224xbf16>
    tpu.vector_store %arg5[%c0_71, %c3, %c0_72, %c0_73], %163 {strides = array<i32>} : memref<1x16x8x224xbf16, #tpu.memory_space<vmem>>, vector<1x1x8x224xbf16>,
    %164 = vector.extract_strided_slice %30 {offsets = [0, 0], sizes = [8, 224], strides = [1, 1]} : vector<8x226xf32> to vector<8x224xf32>
    %165 = vector.extract_strided_slice %30 {offsets = [0, 1], sizes = [8, 224], strides = [1, 1]} : vector<8x226xf32> to vector<8x224xf32>
    %166 = vector.extract_strided_slice %30 {offsets = [0, 2], sizes = [8, 224], strides = [1, 1]} : vector<8x226xf32> to vector<8x224xf32>
    %167 = vector.extract_strided_slice %35 {offsets = [0, 0], sizes = [8, 224], strides = [1, 1]} : vector<8x226xf32> to vector<8x224xf32>
    %168 = vector.extract_strided_slice %35 {offsets = [0, 1], sizes = [8, 224], strides = [1, 1]} : vector<8x226xf32> to vector<8x224xf32>
    %169 = vector.extract_strided_slice %35 {offsets = [0, 2], sizes = [8, 224], strides = [1, 1]} : vector<8x226xf32> to vector<8x224xf32>
    %170 = vector.extract_strided_slice %40 {offsets = [0, 0], sizes = [8, 224], strides = [1, 1]} : vector<8x226xf32> to vector<8x224xf32>
    %171 = vector.extract_strided_slice %40 {offsets = [0, 1], sizes = [8, 224], strides = [1, 1]} : vector<8x226xf32> to vector<8x224xf32>
    %172 = vector.extract_strided_slice %40 {offsets = [0, 2], sizes = [8, 224], strides = [1, 1]} : vector<8x226xf32> to vector<8x224xf32>
    %173 = tpu.concatenate %164, %165, %166, %167, %168, %169, %170, %171, %172 in 0 : vector<8x224xf32>, vector<8x224xf32>, vector<8x224xf32>, vector<8x224xf32>, vector<8x224xf32>, vector<8x224xf32>, vector<8x224xf32>, vector<8x224xf32>, vector<8x224xf32> -> vector<72x224xf32>
    %174 = arith.truncf %173 : vector<72x224xf32> to vector<72x224xbf16>
    %cst_74 = arith.constant dense<0.000000e+00> : vector<8x224xf32>
    %175 = tpu.matmul %2, %174, %cst_74 {dimension_numbers = #tpu.dot_dimension_numbers<[1], [0], [0], [1], [0, 0, 1, 1], [], []>} : vector<8x72xbf16>, vector<72x224xbf16>, vector<8x224xf32> -> vector<8x224xf32>
    %176 = arith.addf %175, %5 : vector<8x224xf32>
    %177 = arith.truncf %176 : vector<8x224xf32> to vector<8x224xbf16>
    %c0_75 = arith.constant 0 : index
    %c4 = arith.constant 4 : index
    %c0_76 = arith.constant 0 : index
    %c0_77 = arith.constant 0 : index
    %178 = vector.load %arg5[%c0_75, %c4, %c0_76, %c0_77] : memref<1x16x8x224xbf16, #tpu.memory_space<vmem>>, vector<1x1x8x224xbf16>
    %179 = vector.shape_cast %178 : vector<1x1x8x224xbf16> to vector<8x224xbf16>
    %180 = vector.shape_cast %177 : vector<8x224xbf16> to vector<1x1x8x224xbf16>
    tpu.vector_store %arg5[%c0_75, %c4, %c0_76, %c0_77], %180 {strides = array<i32>} : memref<1x16x8x224xbf16, #tpu.memory_space<vmem>>, vector<1x1x8x224xbf16>,
    %181 = vector.extract_strided_slice %35 {offsets = [0, 0], sizes = [8, 224], strides = [1, 1]} : vector<8x226xf32> to vector<8x224xf32>
    %182 = vector.extract_strided_slice %35 {offsets = [0, 1], sizes = [8, 224], strides = [1, 1]} : vector<8x226xf32> to vector<8x224xf32>
    %183 = vector.extract_strided_slice %35 {offsets = [0, 2], sizes = [8, 224], strides = [1, 1]} : vector<8x226xf32> to vector<8x224xf32>
    %184 = vector.extract_strided_slice %40 {offsets = [0, 0], sizes = [8, 224], strides = [1, 1]} : vector<8x226xf32> to vector<8x224xf32>
    %185 = vector.extract_strided_slice %40 {offsets = [0, 1], sizes = [8, 224], strides = [1, 1]} : vector<8x226xf32> to vector<8x224xf32>
    %186 = vector.extract_strided_slice %40 {offsets = [0, 2], sizes = [8, 224], strides = [1, 1]} : vector<8x226xf32> to vector<8x224xf32>
    %187 = vector.extract_strided_slice %45 {offsets = [0, 0], sizes = [8, 224], strides = [1, 1]} : vector<8x226xf32> to vector<8x224xf32>
    %188 = vector.extract_strided_slice %45 {offsets = [0, 1], sizes = [8, 224], strides = [1, 1]} : vector<8x226xf32> to vector<8x224xf32>
    %189 = vector.extract_strided_slice %45 {offsets = [0, 2], sizes = [8, 224], strides = [1, 1]} : vector<8x226xf32> to vector<8x224xf32>
    %190 = tpu.concatenate %181, %182, %183, %184, %185, %186, %187, %188, %189 in 0 : vector<8x224xf32>, vector<8x224xf32>, vector<8x224xf32>, vector<8x224xf32>, vector<8x224xf32>, vector<8x224xf32>, vector<8x224xf32>, vector<8x224xf32>, vector<8x224xf32> -> vector<72x224xf32>
    %191 = arith.truncf %190 : vector<72x224xf32> to vector<72x224xbf16>
    %cst_78 = arith.constant dense<0.000000e+00> : vector<8x224xf32>
    %192 = tpu.matmul %2, %191, %cst_78 {dimension_numbers = #tpu.dot_dimension_numbers<[1], [0], [0], [1], [0, 0, 1, 1], [], []>} : vector<8x72xbf16>, vector<72x224xbf16>, vector<8x224xf32> -> vector<8x224xf32>
    %193 = arith.addf %192, %5 : vector<8x224xf32>
    %194 = arith.truncf %193 : vector<8x224xf32> to vector<8x224xbf16>
    %c0_79 = arith.constant 0 : index
    %c5 = arith.constant 5 : index
    %c0_80 = arith.constant 0 : index
    %c0_81 = arith.constant 0 : index
    %195 = vector.load %arg5[%c0_79, %c5, %c0_80, %c0_81] : memref<1x16x8x224xbf16, #tpu.memory_space<vmem>>, vector<1x1x8x224xbf16>
    %196 = vector.shape_cast %195 : vector<1x1x8x224xbf16> to vector<8x224xbf16>
    %197 = vector.shape_cast %194 : vector<8x224xbf16> to vector<1x1x8x224xbf16>
    tpu.vector_store %arg5[%c0_79, %c5, %c0_80, %c0_81], %197 {strides = array<i32>} : memref<1x16x8x224xbf16, #tpu.memory_space<vmem>>, vector<1x1x8x224xbf16>,
    %198 = vector.extract_strided_slice %40 {offsets = [0, 0], sizes = [8, 224], strides = [1, 1]} : vector<8x226xf32> to vector<8x224xf32>
    %199 = vector.extract_strided_slice %40 {offsets = [0, 1], sizes = [8, 224], strides = [1, 1]} : vector<8x226xf32> to vector<8x224xf32>
    %200 = vector.extract_strided_slice %40 {offsets = [0, 2], sizes = [8, 224], strides = [1, 1]} : vector<8x226xf32> to vector<8x224xf32>
    %201 = vector.extract_strided_slice %45 {offsets = [0, 0], sizes = [8, 224], strides = [1, 1]} : vector<8x226xf32> to vector<8x224xf32>
    %202 = vector.extract_strided_slice %45 {offsets = [0, 1], sizes = [8, 224], strides = [1, 1]} : vector<8x226xf32> to vector<8x224xf32>
    %203 = vector.extract_strided_slice %45 {offsets = [0, 2], sizes = [8, 224], strides = [1, 1]} : vector<8x226xf32> to vector<8x224xf32>
    %204 = vector.extract_strided_slice %50 {offsets = [0, 0], sizes = [8, 224], strides = [1, 1]} : vector<8x226xf32> to vector<8x224xf32>
    %205 = vector.extract_strided_slice %50 {offsets = [0, 1], sizes = [8, 224], strides = [1, 1]} : vector<8x226xf32> to vector<8x224xf32>
    %206 = vector.extract_strided_slice %50 {offsets = [0, 2], sizes = [8, 224], strides = [1, 1]} : vector<8x226xf32> to vector<8x224xf32>
    %207 = tpu.concatenate %198, %199, %200, %201, %202, %203, %204, %205, %206 in 0 : vector<8x224xf32>, vector<8x224xf32>, vector<8x224xf32>, vector<8x224xf32>, vector<8x224xf32>, vector<8x224xf32>, vector<8x224xf32>, vector<8x224xf32>, vector<8x224xf32> -> vector<72x224xf32>
    %208 = arith.truncf %207 : vector<72x224xf32> to vector<72x224xbf16>
    %cst_82 = arith.constant dense<0.000000e+00> : vector<8x224xf32>
    %209 = tpu.matmul %2, %208, %cst_82 {dimension_numbers = #tpu.dot_dimension_numbers<[1], [0], [0], [1], [0, 0, 1, 1], [], []>} : vector<8x72xbf16>, vector<72x224xbf16>, vector<8x224xf32> -> vector<8x224xf32>
    %210 = arith.addf %209, %5 : vector<8x224xf32>
    %211 = arith.truncf %210 : vector<8x224xf32> to vector<8x224xbf16>
    %c0_83 = arith.constant 0 : index
    %c6 = arith.constant 6 : index
    %c0_84 = arith.constant 0 : index
    %c0_85 = arith.constant 0 : index
    %212 = vector.load %arg5[%c0_83, %c6, %c0_84, %c0_85] : memref<1x16x8x224xbf16, #tpu.memory_space<vmem>>, vector<1x1x8x224xbf16>
    %213 = vector.shape_cast %212 : vector<1x1x8x224xbf16> to vector<8x224xbf16>
    %214 = vector.shape_cast %211 : vector<8x224xbf16> to vector<1x1x8x224xbf16>
    tpu.vector_store %arg5[%c0_83, %c6, %c0_84, %c0_85], %214 {strides = array<i32>} : memref<1x16x8x224xbf16, #tpu.memory_space<vmem>>, vector<1x1x8x224xbf16>,
    %215 = vector.extract_strided_slice %45 {offsets = [0, 0], sizes = [8, 224], strides = [1, 1]} : vector<8x226xf32> to vector<8x224xf32>
    %216 = vector.extract_strided_slice %45 {offsets = [0, 1], sizes = [8, 224], strides = [1, 1]} : vector<8x226xf32> to vector<8x224xf32>
    %217 = vector.extract_strided_slice %45 {offsets = [0, 2], sizes = [8, 224], strides = [1, 1]} : vector<8x226xf32> to vector<8x224xf32>
    %218 = vector.extract_strided_slice %50 {offsets = [0, 0], sizes = [8, 224], strides = [1, 1]} : vector<8x226xf32> to vector<8x224xf32>
    %219 = vector.extract_strided_slice %50 {offsets = [0, 1], sizes = [8, 224], strides = [1, 1]} : vector<8x226xf32> to vector<8x224xf32>
    %220 = vector.extract_strided_slice %50 {offsets = [0, 2], sizes = [8, 224], strides = [1, 1]} : vector<8x226xf32> to vector<8x224xf32>
    %221 = vector.extract_strided_slice %55 {offsets = [0, 0], sizes = [8, 224], strides = [1, 1]} : vector<8x226xf32> to vector<8x224xf32>
    %222 = vector.extract_strided_slice %55 {offsets = [0, 1], sizes = [8, 224], strides = [1, 1]} : vector<8x226xf32> to vector<8x224xf32>
    %223 = vector.extract_strided_slice %55 {offsets = [0, 2], sizes = [8, 224], strides = [1, 1]} : vector<8x226xf32> to vector<8x224xf32>
    %224 = tpu.concatenate %215, %216, %217, %218, %219, %220, %221, %222, %223 in 0 : vector<8x224xf32>, vector<8x224xf32>, vector<8x224xf32>, vector<8x224xf32>, vector<8x224xf32>, vector<8x224xf32>, vector<8x224xf32>, vector<8x224xf32>, vector<8x224xf32> -> vector<72x224xf32>
    %225 = arith.truncf %224 : vector<72x224xf32> to vector<72x224xbf16>
    %cst_86 = arith.constant dense<0.000000e+00> : vector<8x224xf32>
    %226 = tpu.matmul %2, %225, %cst_86 {dimension_numbers = #tpu.dot_dimension_numbers<[1], [0], [0], [1], [0, 0, 1, 1], [], []>} : vector<8x72xbf16>, vector<72x224xbf16>, vector<8x224xf32> -> vector<8x224xf32>
    %227 = arith.addf %226, %5 : vector<8x224xf32>
    %228 = arith.truncf %227 : vector<8x224xf32> to vector<8x224xbf16>
    %c0_87 = arith.constant 0 : index
    %c7 = arith.constant 7 : index
    %c0_88 = arith.constant 0 : index
    %c0_89 = arith.constant 0 : index
    %229 = vector.load %arg5[%c0_87, %c7, %c0_88, %c0_89] : memref<1x16x8x224xbf16, #tpu.memory_space<vmem>>, vector<1x1x8x224xbf16>
    %230 = vector.shape_cast %229 : vector<1x1x8x224xbf16> to vector<8x224xbf16>
    %231 = vector.shape_cast %228 : vector<8x224xbf16> to vector<1x1x8x224xbf16>
    tpu.vector_store %arg5[%c0_87, %c7, %c0_88, %c0_89], %231 {strides = array<i32>} : memref<1x16x8x224xbf16, #tpu.memory_space<vmem>>, vector<1x1x8x224xbf16>,
    %232 = vector.extract_strided_slice %50 {offsets = [0, 0], sizes = [8, 224], strides = [1, 1]} : vector<8x226xf32> to vector<8x224xf32>
    %233 = vector.extract_strided_slice %50 {offsets = [0, 1], sizes = [8, 224], strides = [1, 1]} : vector<8x226xf32> to vector<8x224xf32>
    %234 = vector.extract_strided_slice %50 {offsets = [0, 2], sizes = [8, 224], strides = [1, 1]} : vector<8x226xf32> to vector<8x224xf32>
    %235 = vector.extract_strided_slice %55 {offsets = [0, 0], sizes = [8, 224], strides = [1, 1]} : vector<8x226xf32> to vector<8x224xf32>
    %236 = vector.extract_strided_slice %55 {offsets = [0, 1], sizes = [8, 224], strides = [1, 1]} : vector<8x226xf32> to vector<8x224xf32>
    %237 = vector.extract_strided_slice %55 {offsets = [0, 2], sizes = [8, 224], strides = [1, 1]} : vector<8x226xf32> to vector<8x224xf32>
    %238 = vector.extract_strided_slice %60 {offsets = [0, 0], sizes = [8, 224], strides = [1, 1]} : vector<8x226xf32> to vector<8x224xf32>
    %239 = vector.extract_strided_slice %60 {offsets = [0, 1], sizes = [8, 224], strides = [1, 1]} : vector<8x226xf32> to vector<8x224xf32>
    %240 = vector.extract_strided_slice %60 {offsets = [0, 2], sizes = [8, 224], strides = [1, 1]} : vector<8x226xf32> to vector<8x224xf32>
    %241 = tpu.concatenate %232, %233, %234, %235, %236, %237, %238, %239, %240 in 0 : vector<8x224xf32>, vector<8x224xf32>, vector<8x224xf32>, vector<8x224xf32>, vector<8x224xf32>, vector<8x224xf32>, vector<8x224xf32>, vector<8x224xf32>, vector<8x224xf32> -> vector<72x224xf32>
    %242 = arith.truncf %241 : vector<72x224xf32> to vector<72x224xbf16>
    %cst_90 = arith.constant dense<0.000000e+00> : vector<8x224xf32>
    %243 = tpu.matmul %2, %242, %cst_90 {dimension_numbers = #tpu.dot_dimension_numbers<[1], [0], [0], [1], [0, 0, 1, 1], [], []>} : vector<8x72xbf16>, vector<72x224xbf16>, vector<8x224xf32> -> vector<8x224xf32>
    %244 = arith.addf %243, %5 : vector<8x224xf32>
    %245 = arith.truncf %244 : vector<8x224xf32> to vector<8x224xbf16>
    %c0_91 = arith.constant 0 : index
    %c8 = arith.constant 8 : index
    %c0_92 = arith.constant 0 : index
    %c0_93 = arith.constant 0 : index
    %246 = vector.load %arg5[%c0_91, %c8, %c0_92, %c0_93] : memref<1x16x8x224xbf16, #tpu.memory_space<vmem>>, vector<1x1x8x224xbf16>
    %247 = vector.shape_cast %246 : vector<1x1x8x224xbf16> to vector<8x224xbf16>
    %248 = vector.shape_cast %245 : vector<8x224xbf16> to vector<1x1x8x224xbf16>
    tpu.vector_store %arg5[%c0_91, %c8, %c0_92, %c0_93], %248 {strides = array<i32>} : memref<1x16x8x224xbf16, #tpu.memory_space<vmem>>, vector<1x1x8x224xbf16>,
    %249 = vector.extract_strided_slice %55 {offsets = [0, 0], sizes = [8, 224], strides = [1, 1]} : vector<8x226xf32> to vector<8x224xf32>
    %250 = vector.extract_strided_slice %55 {offsets = [0, 1], sizes = [8, 224], strides = [1, 1]} : vector<8x226xf32> to vector<8x224xf32>
    %251 = vector.extract_strided_slice %55 {offsets = [0, 2], sizes = [8, 224], strides = [1, 1]} : vector<8x226xf32> to vector<8x224xf32>
    %252 = vector.extract_strided_slice %60 {offsets = [0, 0], sizes = [8, 224], strides = [1, 1]} : vector<8x226xf32> to vector<8x224xf32>
    %253 = vector.extract_strided_slice %60 {offsets = [0, 1], sizes = [8, 224], strides = [1, 1]} : vector<8x226xf32> to vector<8x224xf32>
    %254 = vector.extract_strided_slice %60 {offsets = [0, 2], sizes = [8, 224], strides = [1, 1]} : vector<8x226xf32> to vector<8x224xf32>
    %255 = vector.extract_strided_slice %65 {offsets = [0, 0], sizes = [8, 224], strides = [1, 1]} : vector<8x226xf32> to vector<8x224xf32>
    %256 = vector.extract_strided_slice %65 {offsets = [0, 1], sizes = [8, 224], strides = [1, 1]} : vector<8x226xf32> to vector<8x224xf32>
    %257 = vector.extract_strided_slice %65 {offsets = [0, 2], sizes = [8, 224], strides = [1, 1]} : vector<8x226xf32> to vector<8x224xf32>
    %258 = tpu.concatenate %249, %250, %251, %252, %253, %254, %255, %256, %257 in 0 : vector<8x224xf32>, vector<8x224xf32>, vector<8x224xf32>, vector<8x224xf32>, vector<8x224xf32>, vector<8x224xf32>, vector<8x224xf32>, vector<8x224xf32>, vector<8x224xf32> -> vector<72x224xf32>
    %259 = arith.truncf %258 : vector<72x224xf32> to vector<72x224xbf16>
    %cst_94 = arith.constant dense<0.000000e+00> : vector<8x224xf32>
    %260 = tpu.matmul %2, %259, %cst_94 {dimension_numbers = #tpu.dot_dimension_numbers<[1], [0], [0], [1], [0, 0, 1, 1], [], []>} : vector<8x72xbf16>, vector<72x224xbf16>, vector<8x224xf32> -> vector<8x224xf32>
    %261 = arith.addf %260, %5 : vector<8x224xf32>
    %262 = arith.truncf %261 : vector<8x224xf32> to vector<8x224xbf16>
    %c0_95 = arith.constant 0 : index
    %c9 = arith.constant 9 : index
    %c0_96 = arith.constant 0 : index
    %c0_97 = arith.constant 0 : index
    %263 = vector.load %arg5[%c0_95, %c9, %c0_96, %c0_97] : memref<1x16x8x224xbf16, #tpu.memory_space<vmem>>, vector<1x1x8x224xbf16>
    %264 = vector.shape_cast %263 : vector<1x1x8x224xbf16> to vector<8x224xbf16>
    %265 = vector.shape_cast %262 : vector<8x224xbf16> to vector<1x1x8x224xbf16>
    tpu.vector_store %arg5[%c0_95, %c9, %c0_96, %c0_97], %265 {strides = array<i32>} : memref<1x16x8x224xbf16, #tpu.memory_space<vmem>>, vector<1x1x8x224xbf16>,
    %266 = vector.extract_strided_slice %60 {offsets = [0, 0], sizes = [8, 224], strides = [1, 1]} : vector<8x226xf32> to vector<8x224xf32>
    %267 = vector.extract_strided_slice %60 {offsets = [0, 1], sizes = [8, 224], strides = [1, 1]} : vector<8x226xf32> to vector<8x224xf32>
    %268 = vector.extract_strided_slice %60 {offsets = [0, 2], sizes = [8, 224], strides = [1, 1]} : vector<8x226xf32> to vector<8x224xf32>
    %269 = vector.extract_strided_slice %65 {offsets = [0, 0], sizes = [8, 224], strides = [1, 1]} : vector<8x226xf32> to vector<8x224xf32>
    %270 = vector.extract_strided_slice %65 {offsets = [0, 1], sizes = [8, 224], strides = [1, 1]} : vector<8x226xf32> to vector<8x224xf32>
    %271 = vector.extract_strided_slice %65 {offsets = [0, 2], sizes = [8, 224], strides = [1, 1]} : vector<8x226xf32> to vector<8x224xf32>
    %272 = vector.extract_strided_slice %70 {offsets = [0, 0], sizes = [8, 224], strides = [1, 1]} : vector<8x226xf32> to vector<8x224xf32>
    %273 = vector.extract_strided_slice %70 {offsets = [0, 1], sizes = [8, 224], strides = [1, 1]} : vector<8x226xf32> to vector<8x224xf32>
    %274 = vector.extract_strided_slice %70 {offsets = [0, 2], sizes = [8, 224], strides = [1, 1]} : vector<8x226xf32> to vector<8x224xf32>
    %275 = tpu.concatenate %266, %267, %268, %269, %270, %271, %272, %273, %274 in 0 : vector<8x224xf32>, vector<8x224xf32>, vector<8x224xf32>, vector<8x224xf32>, vector<8x224xf32>, vector<8x224xf32>, vector<8x224xf32>, vector<8x224xf32>, vector<8x224xf32> -> vector<72x224xf32>
    %276 = arith.truncf %275 : vector<72x224xf32> to vector<72x224xbf16>
    %cst_98 = arith.constant dense<0.000000e+00> : vector<8x224xf32>
    %277 = tpu.matmul %2, %276, %cst_98 {dimension_numbers = #tpu.dot_dimension_numbers<[1], [0], [0], [1], [0, 0, 1, 1], [], []>} : vector<8x72xbf16>, vector<72x224xbf16>, vector<8x224xf32> -> vector<8x224xf32>
    %278 = arith.addf %277, %5 : vector<8x224xf32>
    %279 = arith.truncf %278 : vector<8x224xf32> to vector<8x224xbf16>
    %c0_99 = arith.constant 0 : index
    %c10 = arith.constant 10 : index
    %c0_100 = arith.constant 0 : index
    %c0_101 = arith.constant 0 : index
    %280 = vector.load %arg5[%c0_99, %c10, %c0_100, %c0_101] : memref<1x16x8x224xbf16, #tpu.memory_space<vmem>>, vector<1x1x8x224xbf16>
    %281 = vector.shape_cast %280 : vector<1x1x8x224xbf16> to vector<8x224xbf16>
    %282 = vector.shape_cast %279 : vector<8x224xbf16> to vector<1x1x8x224xbf16>
    tpu.vector_store %arg5[%c0_99, %c10, %c0_100, %c0_101], %282 {strides = array<i32>} : memref<1x16x8x224xbf16, #tpu.memory_space<vmem>>, vector<1x1x8x224xbf16>,
    %283 = vector.extract_strided_slice %65 {offsets = [0, 0], sizes = [8, 224], strides = [1, 1]} : vector<8x226xf32> to vector<8x224xf32>
    %284 = vector.extract_strided_slice %65 {offsets = [0, 1], sizes = [8, 224], strides = [1, 1]} : vector<8x226xf32> to vector<8x224xf32>
    %285 = vector.extract_strided_slice %65 {offsets = [0, 2], sizes = [8, 224], strides = [1, 1]} : vector<8x226xf32> to vector<8x224xf32>
    %286 = vector.extract_strided_slice %70 {offsets = [0, 0], sizes = [8, 224], strides = [1, 1]} : vector<8x226xf32> to vector<8x224xf32>
    %287 = vector.extract_strided_slice %70 {offsets = [0, 1], sizes = [8, 224], strides = [1, 1]} : vector<8x226xf32> to vector<8x224xf32>
    %288 = vector.extract_strided_slice %70 {offsets = [0, 2], sizes = [8, 224], strides = [1, 1]} : vector<8x226xf32> to vector<8x224xf32>
    %289 = vector.extract_strided_slice %75 {offsets = [0, 0], sizes = [8, 224], strides = [1, 1]} : vector<8x226xf32> to vector<8x224xf32>
    %290 = vector.extract_strided_slice %75 {offsets = [0, 1], sizes = [8, 224], strides = [1, 1]} : vector<8x226xf32> to vector<8x224xf32>
    %291 = vector.extract_strided_slice %75 {offsets = [0, 2], sizes = [8, 224], strides = [1, 1]} : vector<8x226xf32> to vector<8x224xf32>
    %292 = tpu.concatenate %283, %284, %285, %286, %287, %288, %289, %290, %291 in 0 : vector<8x224xf32>, vector<8x224xf32>, vector<8x224xf32>, vector<8x224xf32>, vector<8x224xf32>, vector<8x224xf32>, vector<8x224xf32>, vector<8x224xf32>, vector<8x224xf32> -> vector<72x224xf32>
    %293 = arith.truncf %292 : vector<72x224xf32> to vector<72x224xbf16>
    %cst_102 = arith.constant dense<0.000000e+00> : vector<8x224xf32>
    %294 = tpu.matmul %2, %293, %cst_102 {dimension_numbers = #tpu.dot_dimension_numbers<[1], [0], [0], [1], [0, 0, 1, 1], [], []>} : vector<8x72xbf16>, vector<72x224xbf16>, vector<8x224xf32> -> vector<8x224xf32>
    %295 = arith.addf %294, %5 : vector<8x224xf32>
    %296 = arith.truncf %295 : vector<8x224xf32> to vector<8x224xbf16>
    %c0_103 = arith.constant 0 : index
    %c11 = arith.constant 11 : index
    %c0_104 = arith.constant 0 : index
    %c0_105 = arith.constant 0 : index
    %297 = vector.load %arg5[%c0_103, %c11, %c0_104, %c0_105] : memref<1x16x8x224xbf16, #tpu.memory_space<vmem>>, vector<1x1x8x224xbf16>
    %298 = vector.shape_cast %297 : vector<1x1x8x224xbf16> to vector<8x224xbf16>
    %299 = vector.shape_cast %296 : vector<8x224xbf16> to vector<1x1x8x224xbf16>
    tpu.vector_store %arg5[%c0_103, %c11, %c0_104, %c0_105], %299 {strides = array<i32>} : memref<1x16x8x224xbf16, #tpu.memory_space<vmem>>, vector<1x1x8x224xbf16>,
    %300 = vector.extract_strided_slice %70 {offsets = [0, 0], sizes = [8, 224], strides = [1, 1]} : vector<8x226xf32> to vector<8x224xf32>
    %301 = vector.extract_strided_slice %70 {offsets = [0, 1], sizes = [8, 224], strides = [1, 1]} : vector<8x226xf32> to vector<8x224xf32>
    %302 = vector.extract_strided_slice %70 {offsets = [0, 2], sizes = [8, 224], strides = [1, 1]} : vector<8x226xf32> to vector<8x224xf32>
    %303 = vector.extract_strided_slice %75 {offsets = [0, 0], sizes = [8, 224], strides = [1, 1]} : vector<8x226xf32> to vector<8x224xf32>
    %304 = vector.extract_strided_slice %75 {offsets = [0, 1], sizes = [8, 224], strides = [1, 1]} : vector<8x226xf32> to vector<8x224xf32>
    %305 = vector.extract_strided_slice %75 {offsets = [0, 2], sizes = [8, 224], strides = [1, 1]} : vector<8x226xf32> to vector<8x224xf32>
    %306 = vector.extract_strided_slice %80 {offsets = [0, 0], sizes = [8, 224], strides = [1, 1]} : vector<8x226xf32> to vector<8x224xf32>
    %307 = vector.extract_strided_slice %80 {offsets = [0, 1], sizes = [8, 224], strides = [1, 1]} : vector<8x226xf32> to vector<8x224xf32>
    %308 = vector.extract_strided_slice %80 {offsets = [0, 2], sizes = [8, 224], strides = [1, 1]} : vector<8x226xf32> to vector<8x224xf32>
    %309 = tpu.concatenate %300, %301, %302, %303, %304, %305, %306, %307, %308 in 0 : vector<8x224xf32>, vector<8x224xf32>, vector<8x224xf32>, vector<8x224xf32>, vector<8x224xf32>, vector<8x224xf32>, vector<8x224xf32>, vector<8x224xf32>, vector<8x224xf32> -> vector<72x224xf32>
    %310 = arith.truncf %309 : vector<72x224xf32> to vector<72x224xbf16>
    %cst_106 = arith.constant dense<0.000000e+00> : vector<8x224xf32>
    %311 = tpu.matmul %2, %310, %cst_106 {dimension_numbers = #tpu.dot_dimension_numbers<[1], [0], [0], [1], [0, 0, 1, 1], [], []>} : vector<8x72xbf16>, vector<72x224xbf16>, vector<8x224xf32> -> vector<8x224xf32>
    %312 = arith.addf %311, %5 : vector<8x224xf32>
    %313 = arith.truncf %312 : vector<8x224xf32> to vector<8x224xbf16>
    %c0_107 = arith.constant 0 : index
    %c12 = arith.constant 12 : index
    %c0_108 = arith.constant 0 : index
    %c0_109 = arith.constant 0 : index
    %314 = vector.load %arg5[%c0_107, %c12, %c0_108, %c0_109] : memref<1x16x8x224xbf16, #tpu.memory_space<vmem>>, vector<1x1x8x224xbf16>
    %315 = vector.shape_cast %314 : vector<1x1x8x224xbf16> to vector<8x224xbf16>
    %316 = vector.shape_cast %313 : vector<8x224xbf16> to vector<1x1x8x224xbf16>
    tpu.vector_store %arg5[%c0_107, %c12, %c0_108, %c0_109], %316 {strides = array<i32>} : memref<1x16x8x224xbf16, #tpu.memory_space<vmem>>, vector<1x1x8x224xbf16>,
    %317 = vector.extract_strided_slice %75 {offsets = [0, 0], sizes = [8, 224], strides = [1, 1]} : vector<8x226xf32> to vector<8x224xf32>
    %318 = vector.extract_strided_slice %75 {offsets = [0, 1], sizes = [8, 224], strides = [1, 1]} : vector<8x226xf32> to vector<8x224xf32>
    %319 = vector.extract_strided_slice %75 {offsets = [0, 2], sizes = [8, 224], strides = [1, 1]} : vector<8x226xf32> to vector<8x224xf32>
    %320 = vector.extract_strided_slice %80 {offsets = [0, 0], sizes = [8, 224], strides = [1, 1]} : vector<8x226xf32> to vector<8x224xf32>
    %321 = vector.extract_strided_slice %80 {offsets = [0, 1], sizes = [8, 224], strides = [1, 1]} : vector<8x226xf32> to vector<8x224xf32>
    %322 = vector.extract_strided_slice %80 {offsets = [0, 2], sizes = [8, 224], strides = [1, 1]} : vector<8x226xf32> to vector<8x224xf32>
    %323 = vector.extract_strided_slice %85 {offsets = [0, 0], sizes = [8, 224], strides = [1, 1]} : vector<8x226xf32> to vector<8x224xf32>
    %324 = vector.extract_strided_slice %85 {offsets = [0, 1], sizes = [8, 224], strides = [1, 1]} : vector<8x226xf32> to vector<8x224xf32>
    %325 = vector.extract_strided_slice %85 {offsets = [0, 2], sizes = [8, 224], strides = [1, 1]} : vector<8x226xf32> to vector<8x224xf32>
    %326 = tpu.concatenate %317, %318, %319, %320, %321, %322, %323, %324, %325 in 0 : vector<8x224xf32>, vector<8x224xf32>, vector<8x224xf32>, vector<8x224xf32>, vector<8x224xf32>, vector<8x224xf32>, vector<8x224xf32>, vector<8x224xf32>, vector<8x224xf32> -> vector<72x224xf32>
    %327 = arith.truncf %326 : vector<72x224xf32> to vector<72x224xbf16>
    %cst_110 = arith.constant dense<0.000000e+00> : vector<8x224xf32>
    %328 = tpu.matmul %2, %327, %cst_110 {dimension_numbers = #tpu.dot_dimension_numbers<[1], [0], [0], [1], [0, 0, 1, 1], [], []>} : vector<8x72xbf16>, vector<72x224xbf16>, vector<8x224xf32> -> vector<8x224xf32>
    %329 = arith.addf %328, %5 : vector<8x224xf32>
    %330 = arith.truncf %329 : vector<8x224xf32> to vector<8x224xbf16>
    %c0_111 = arith.constant 0 : index
    %c13 = arith.constant 13 : index
    %c0_112 = arith.constant 0 : index
    %c0_113 = arith.constant 0 : index
    %331 = vector.load %arg5[%c0_111, %c13, %c0_112, %c0_113] : memref<1x16x8x224xbf16, #tpu.memory_space<vmem>>, vector<1x1x8x224xbf16>
    %332 = vector.shape_cast %331 : vector<1x1x8x224xbf16> to vector<8x224xbf16>
    %333 = vector.shape_cast %330 : vector<8x224xbf16> to vector<1x1x8x224xbf16>
    tpu.vector_store %arg5[%c0_111, %c13, %c0_112, %c0_113], %333 {strides = array<i32>} : memref<1x16x8x224xbf16, #tpu.memory_space<vmem>>, vector<1x1x8x224xbf16>,
    %334 = vector.extract_strided_slice %80 {offsets = [0, 0], sizes = [8, 224], strides = [1, 1]} : vector<8x226xf32> to vector<8x224xf32>
    %335 = vector.extract_strided_slice %80 {offsets = [0, 1], sizes = [8, 224], strides = [1, 1]} : vector<8x226xf32> to vector<8x224xf32>
    %336 = vector.extract_strided_slice %80 {offsets = [0, 2], sizes = [8, 224], strides = [1, 1]} : vector<8x226xf32> to vector<8x224xf32>
    %337 = vector.extract_strided_slice %85 {offsets = [0, 0], sizes = [8, 224], strides = [1, 1]} : vector<8x226xf32> to vector<8x224xf32>
    %338 = vector.extract_strided_slice %85 {offsets = [0, 1], sizes = [8, 224], strides = [1, 1]} : vector<8x226xf32> to vector<8x224xf32>
    %339 = vector.extract_strided_slice %85 {offsets = [0, 2], sizes = [8, 224], strides = [1, 1]} : vector<8x226xf32> to vector<8x224xf32>
    %340 = vector.extract_strided_slice %90 {offsets = [0, 0], sizes = [8, 224], strides = [1, 1]} : vector<8x226xf32> to vector<8x224xf32>
    %341 = vector.extract_strided_slice %90 {offsets = [0, 1], sizes = [8, 224], strides = [1, 1]} : vector<8x226xf32> to vector<8x224xf32>
    %342 = vector.extract_strided_slice %90 {offsets = [0, 2], sizes = [8, 224], strides = [1, 1]} : vector<8x226xf32> to vector<8x224xf32>
    %343 = tpu.concatenate %334, %335, %336, %337, %338, %339, %340, %341, %342 in 0 : vector<8x224xf32>, vector<8x224xf32>, vector<8x224xf32>, vector<8x224xf32>, vector<8x224xf32>, vector<8x224xf32>, vector<8x224xf32>, vector<8x224xf32>, vector<8x224xf32> -> vector<72x224xf32>
    %344 = arith.truncf %343 : vector<72x224xf32> to vector<72x224xbf16>
    %cst_114 = arith.constant dense<0.000000e+00> : vector<8x224xf32>
    %345 = tpu.matmul %2, %344, %cst_114 {dimension_numbers = #tpu.dot_dimension_numbers<[1], [0], [0], [1], [0, 0, 1, 1], [], []>} : vector<8x72xbf16>, vector<72x224xbf16>, vector<8x224xf32> -> vector<8x224xf32>
    %346 = arith.addf %345, %5 : vector<8x224xf32>
    %347 = arith.truncf %346 : vector<8x224xf32> to vector<8x224xbf16>
    %c0_115 = arith.constant 0 : index
    %c14 = arith.constant 14 : index
    %c0_116 = arith.constant 0 : index
    %c0_117 = arith.constant 0 : index
    %348 = vector.load %arg5[%c0_115, %c14, %c0_116, %c0_117] : memref<1x16x8x224xbf16, #tpu.memory_space<vmem>>, vector<1x1x8x224xbf16>
    %349 = vector.shape_cast %348 : vector<1x1x8x224xbf16> to vector<8x224xbf16>
    %350 = vector.shape_cast %347 : vector<8x224xbf16> to vector<1x1x8x224xbf16>
    tpu.vector_store %arg5[%c0_115, %c14, %c0_116, %c0_117], %350 {strides = array<i32>} : memref<1x16x8x224xbf16, #tpu.memory_space<vmem>>, vector<1x1x8x224xbf16>,
    %351 = vector.extract_strided_slice %85 {offsets = [0, 0], sizes = [8, 224], strides = [1, 1]} : vector<8x226xf32> to vector<8x224xf32>
    %352 = vector.extract_strided_slice %85 {offsets = [0, 1], sizes = [8, 224], strides = [1, 1]} : vector<8x226xf32> to vector<8x224xf32>
    %353 = vector.extract_strided_slice %85 {offsets = [0, 2], sizes = [8, 224], strides = [1, 1]} : vector<8x226xf32> to vector<8x224xf32>
    %354 = vector.extract_strided_slice %90 {offsets = [0, 0], sizes = [8, 224], strides = [1, 1]} : vector<8x226xf32> to vector<8x224xf32>
    %355 = vector.extract_strided_slice %90 {offsets = [0, 1], sizes = [8, 224], strides = [1, 1]} : vector<8x226xf32> to vector<8x224xf32>
    %356 = vector.extract_strided_slice %90 {offsets = [0, 2], sizes = [8, 224], strides = [1, 1]} : vector<8x226xf32> to vector<8x224xf32>
    %357 = vector.extract_strided_slice %95 {offsets = [0, 0], sizes = [8, 224], strides = [1, 1]} : vector<8x226xf32> to vector<8x224xf32>
    %358 = vector.extract_strided_slice %95 {offsets = [0, 1], sizes = [8, 224], strides = [1, 1]} : vector<8x226xf32> to vector<8x224xf32>
    %359 = vector.extract_strided_slice %95 {offsets = [0, 2], sizes = [8, 224], strides = [1, 1]} : vector<8x226xf32> to vector<8x224xf32>
    %360 = tpu.concatenate %351, %352, %353, %354, %355, %356, %357, %358, %359 in 0 : vector<8x224xf32>, vector<8x224xf32>, vector<8x224xf32>, vector<8x224xf32>, vector<8x224xf32>, vector<8x224xf32>, vector<8x224xf32>, vector<8x224xf32>, vector<8x224xf32> -> vector<72x224xf32>
    %361 = arith.truncf %360 : vector<72x224xf32> to vector<72x224xbf16>
    %cst_118 = arith.constant dense<0.000000e+00> : vector<8x224xf32>
    %362 = tpu.matmul %2, %361, %cst_118 {dimension_numbers = #tpu.dot_dimension_numbers<[1], [0], [0], [1], [0, 0, 1, 1], [], []>} : vector<8x72xbf16>, vector<72x224xbf16>, vector<8x224xf32> -> vector<8x224xf32>
    %363 = arith.addf %362, %5 : vector<8x224xf32>
    %364 = arith.truncf %363 : vector<8x224xf32> to vector<8x224xbf16>
    %c0_119 = arith.constant 0 : index
    %c15 = arith.constant 15 : index
    %c0_120 = arith.constant 0 : index
    %c0_121 = arith.constant 0 : index
    %365 = vector.load %arg5[%c0_119, %c15, %c0_120, %c0_121] : memref<1x16x8x224xbf16, #tpu.memory_space<vmem>>, vector<1x1x8x224xbf16>
    %366 = vector.shape_cast %365 : vector<1x1x8x224xbf16> to vector<8x224xbf16>
    %367 = vector.shape_cast %364 : vector<8x224xbf16> to vector<1x1x8x224xbf16>
    tpu.vector_store %arg5[%c0_119, %c15, %c0_120, %c0_121], %367 {strides = array<i32>} : memref<1x16x8x224xbf16, #tpu.memory_space<vmem>>, vector<1x1x8x224xbf16>,
    return
  }
  func.func @transform_0(%arg0: i32, %arg1: i32) -> (i32, i32, i32, i32) {
    %c0_i32 = arith.constant 0 : i32
    %c0_i32_0 = arith.constant 0 : i32
    %c0_i32_1 = arith.constant 0 : i32
    %c0_i32_2 = arith.constant 0 : i32
    return %arg0, %c0_i32, %c0_i32_0, %c0_i32_1 : i32, i32, i32, i32
  }
  func.func @transform_1(%arg0: i32, %arg1: i32) -> (i32, i32) {
    %c0_i32 = arith.constant 0 : i32
    %c0_i32_0 = arith.constant 0 : i32
    %c0_i32_1 = arith.constant 0 : i32
    return %c0_i32, %c0_i32_0 : i32, i32
  }
  func.func @transform_2(%arg0: i32, %arg1: i32) -> (i32, i32) {
    %c0_i32 = arith.constant 0 : i32
    %c0_i32_0 = arith.constant 0 : i32
    %c0_i32_1 = arith.constant 0 : i32
    return %c0_i32, %c0_i32_0 : i32, i32
  }
  func.func @transform_3(%arg0: i32, %arg1: i32) -> (i32, i32, i32, i32) {
    %c0_i32 = arith.constant 0 : i32
    %c0_i32_0 = arith.constant 0 : i32
    %c0_i32_1 = arith.constant 0 : i32
    return %arg0, %arg1, %c0_i32, %c0_i32_0 : i32, i32, i32, i32
  }
}

</mosaic_0001>

<llo_original>
// kernel: conv3x3.1
$region0: #{conv3x3.1}
  #allocation0 [shape = 'u32[]', space=smem, size = 0x4, offset = 0x4, fixed_abs, tag = 'smem constant byte address 0x4 - core index']
  #allocation1 [shape = 'u32[144,128]{1,0:T(1,128)}', space=vmem, size = 0x12000, scoped, tag = 'internal scratch']
  %s0 = inlined_call_operand.vmem [shape: bf16[4,226,8,226], index: 0, kind: input, shape index: {}]
  %s1 = inlined_call_operand.vmem [shape: bf16[8,72], index: 1, kind: input, shape index: {}]
  %s2 = inlined_call_operand.vmem [shape: f32[8,1], index: 2, kind: input, shape index: {}]
  %s3 = inlined_call_operand.hbm [shape: bf16[4,224,8,224], index: 3, kind: output, shape index: {}]
  %s4 = sld [smem:[#allocation0]]
  $region45: #{conv3x3.1} parent=0
    _
  %s6 = ssub.s32 1, %s4
  %s7 = scalar_select 0, %s6, %s4
  $region1: #{conv3x3.1} parent=0
    #allocation2 [shape = 'u8[131072]{0}', space=vmem, size = 0x20000, scoped, tag = 'output window, operand 0']
    #allocation3 [shape = 's32[2]{0}', space=sflag, size = 0x8, scoped, tag = 'scoped memory for conv3x3.1']
    %8 = vsyncpa [#allocation3], 0
    %s9 = scalar_lea.sflag [#allocation3], 1
    %10 = vsyncpa %s9, 0
    loop: start=0, step=1, limit=58
    $region2: #{conv3x3.1} parent=1 // loop_pre_header
      _
    $region3: #{conv3x3.1} parent=1 // loop_header
      %s12 = sphi 0, %s16
      %p13 = scmp.ge.s32.totalorder %s12, 58
      %s19 = sphi 0, %s31
      %s20 = sphi 0, %s27
      %s21 = sphi 0, %s19
      %s22 = sphi 0, %s20
      %s23 = sphi 0, %s21
      %s24 = sphi 0, %s22
      %s34 = sphi 0, %s36
      %s37 = sphi 0, %s34
      %s38 = sphi 0, %s37
      %s54 = sphi 0, %s38
      %s58 = sphi 0, %s58
      %s60 = sphi 0, %s58
      %s61 = sphi 0, %s60
      %s75 = sphi 0, %s61
      %s79 = sphi 0, %s79
      %s81 = sphi 0, %s79
      %s82 = sphi 0, %s81
      %s96 = sphi 0, %s82
      %s104 = sphi 0, %s106
      %s107 = sphi 0, %s104
      %s108 = sphi 0, %s107
      %s124 = sphi 0, %s108
    $region4: #{conv3x3.1} parent=1 // loop_header_branch
      %15 = sbr.rel (%p13) target = $region8
    $region5: #{conv3x3.1} parent=1 // loop_body
      %s17 = ssub.s32 %s12, 1
      %s18 = ssub.s32 %s12, 2
      %s25 = sadd.s32 1, %s20
      %p26 = scmp.ge.s32.totalorder %s25, 14
      %s27 = scalar_select %p26, 0, %s25
      %s28 = sadd.s32 1, %s19
      %s29 = scalar_select %p26, %s28, %s19
      %p30 = scmp.ge.s32.totalorder %s29, 4
      %s31 = scalar_select %p30, 0, %s29
      %s32 = ssub.s32 %s19, %s31
      %p33 = scmp.eq.s32.totalorder %s32, 0
      %s35 = sadd.s32 %s34, 1
      %s36 = scalar_select %p33, %s34, %s35
      %p39 = pneg %p33
      %p40 = scmp.eq.s32.totalorder %s12, 55
      %p41 = por %p39, %p40
      %p42 = scmp.ne.s32.totalorder %s34, %s37
      %p43 = scmp.eq.s32.totalorder %s12, 0
      %p44 = por %p42, %p43
      %p45 = scmp.ne.s32.totalorder %s34, %s37
      %p46 = scmp.eq.s32.totalorder %s17, 55
      %p47 = por %p45, %p46
      %p48 = scmp.ne.s32.totalorder %s37, %s38
      %p49 = scmp.eq.s32.totalorder %s17, 0
      %p50 = por %p48, %p49
      %p51 = scmp.ne.s32.totalorder %s37, %s38
      %p52 = scmp.eq.s32.totalorder %s18, 55
      %p53 = por %p51, %p52
      %p55 = scmp.ne.s32.totalorder %s38, %s54
      %p56 = scmp.eq.s32.totalorder %s18, 0
      %p57 = por %p55, %p56
      %s59 = sadd.s32 %s58, 1
      %p62 = scmp.eq.s32.totalorder %s12, 55
      %p63 = scmp.ne.s32.totalorder %s58, %s60
      %p64 = scmp.eq.s32.totalorder %s12, 0
      %p65 = por %p63, %p64
      %p66 = scmp.ne.s32.totalorder %s58, %s60
      %p67 = scmp.eq.s32.totalorder %s17, 55
      %p68 = por %p66, %p67
      %p69 = scmp.ne.s32.totalorder %s60, %s61
      %p70 = scmp.eq.s32.totalorder %s17, 0
      %p71 = por %p69, %p70
      %p72 = scmp.ne.s32.totalorder %s60, %s61
      %p73 = scmp.eq.s32.totalorder %s18, 55
      %p74 = por %p72, %p73
      %p76 = scmp.ne.s32.totalorder %s61, %s75
      %p77 = scmp.eq.s32.totalorder %s18, 0
      %p78 = por %p76, %p77
      %s80 = sadd.s32 %s79, 1
      %p83 = scmp.eq.s32.totalorder %s12, 55
      %p84 = scmp.ne.s32.totalorder %s79, %s81
      %p85 = scmp.eq.s32.totalorder %s12, 0
      %p86 = por %p84, %p85
      %p87 = scmp.ne.s32.totalorder %s79, %s81
      %p88 = scmp.eq.s32.totalorder %s17, 55
      %p89 = por %p87, %p88
      %p90 = scmp.ne.s32.totalorder %s81, %s82
      %p91 = scmp.eq.s32.totalorder %s17, 0
      %p92 = por %p90, %p91
      %p93 = scmp.ne.s32.totalorder %s81, %s82
      %p94 = scmp.eq.s32.totalorder %s18, 55
      %p95 = por %p93, %p94
      %p97 = scmp.ne.s32.totalorder %s82, %s96
      %p98 = scmp.eq.s32.totalorder %s18, 0
      %p99 = por %p97, %p98
      %s100 = ssub.s32 %s19, %s31
      %s101 = ssub.s32 %s20, %s27
      %s102 = sor.u32 %s100, %s101
      %p103 = scmp.eq.s32.totalorder %s102, 0
      %s105 = sadd.s32 %s104, 1
      %s106 = scalar_select %p103, %s104, %s105
      %p109 = pneg %p103
      %p110 = scmp.eq.s32.totalorder %s12, 55
      %p111 = por %p109, %p110
      %p112 = scmp.ne.s32.totalorder %s104, %s107
      %p113 = scmp.eq.s32.totalorder %s12, 0
      %p114 = por %p112, %p113
      %p115 = scmp.ne.s32.totalorder %s104, %s107
      %p116 = scmp.eq.s32.totalorder %s17, 55
      %p117 = por %p115, %p116
      %p118 = scmp.ne.s32.totalorder %s107, %s108
      %p119 = scmp.eq.s32.totalorder %s17, 0
      %p120 = por %p118, %p119
      %p121 = scmp.ne.s32.totalorder %s107, %s108
      %p122 = scmp.eq.s32.totalorder %s18, 55
      %p123 = por %p121, %p122
      %p125 = scmp.ne.s32.totalorder %s108, %s124
      %p126 = scmp.eq.s32.totalorder %s18, 0
      %p127 = por %p125, %p126
      %p128 = scmp.le.s32.totalorder 1, %s12
      %p129 = scmp.lt.s32.totalorder %s12, 57
      %p130 = pnand %p128, %p129
      %p131 = pneg %p130
      // Predicated region
      $region9: #{conv3x3.1} parent=5 // pred_check
        _
      $region10: #{conv3x3.1} parent=5 // pred_check_branch
        %133 = sbr.rel (%p130) target = $region12
      $region11: #{conv3x3.1} parent=5 // pred_region
        %s134 = ssub.s32 %s12, 1
        // Predicated region
        $region13: #{conv3x3.1} parent=11 // pred_check
          %p135 = pneg %p71
        $region14: #{conv3x3.1} parent=11 // pred_check_branch
          %137 = sbr.rel (%p135) target = $region16
        $region15: #{conv3x3.1} parent=11 // pred_region
          _
        $region16: #{conv3x3.1} parent=11 // pred_fallthru
          _
        // Predicated region
        $region17: #{conv3x3.1} parent=11 // pred_check
          %p138 = pneg %p92
        $region18: #{conv3x3.1} parent=11 // pred_check_branch
          %140 = sbr.rel (%p138) target = $region20
        $region19: #{conv3x3.1} parent=11 // pred_region
          _
        $region20: #{conv3x3.1} parent=11 // pred_fallthru
          _
      $region12: #{conv3x3.1} parent=5 // pred_fallthru
        _
      %p141 = scmp.lt.s32.totalorder %s12, 56
      // Predicated region
      $region21: #{conv3x3.1} parent=5 // pred_check
        %p142 = pneg %p141
      $region22: #{conv3x3.1} parent=5 // pred_check_branch
        %144 = sbr.rel (%p142) target = $region24
      $region23: #{conv3x3.1} parent=5 // pred_region
        // Predicated region
        $region25: #{conv3x3.1} parent=23 // pred_check
          %p145 = pneg %p44
        $region26: #{conv3x3.1} parent=23 // pred_check_branch
          %147 = sbr.rel (%p145) target = $region28
        $region27: #{conv3x3.1} parent=23 // pred_region
          %p148 = scmp.lt.s32.totalorder %s19, 3
          %s149 = scalar_select %p148, %s19, 3
          %s150 = smul.addr %s149, 452
          %s151 = smul.addr %s150, 4
          %s152 = scalar_lea.vmem %s0, %s151
        $region28: #{conv3x3.1} parent=23 // pred_fallthru
          _
      $region24: #{conv3x3.1} parent=5 // pred_fallthru
        _
      %p153 = scmp.le.s32.totalorder 1, %s12
      %p154 = scmp.lt.s32.totalorder %s12, 57
      %p155 = pnand %p153, %p154
      %p156 = pneg %p155
      // Predicated region
      $region29: #{conv3x3.1} parent=5 // pred_check
        _
      $region30: #{conv3x3.1} parent=5 // pred_check_branch
        %158 = sbr.rel (%p155) target = $region32
      $region31: #{conv3x3.1} parent=5 // pred_region
        %s159 = ssub.s32 %s12, 1
        %p160 = scmp.lt.s32.totalorder %s21, 3
        %s161 = scalar_select %p160, %s21, 3
        %s162 = smul.addr %s161, 452
        %s163 = smul.addr %s162, 4
        %s164 = scalar_lea.vmem %s0, %s163
        %p165 = pneg %p50
        %p166 = pneg %p47
        %p167 = pneg %p71
        %p168 = pneg %p68
        %p169 = pneg %p92
        %p170 = pneg %p89
        %p171 = pneg %p120
        %p172 = pneg %p117
        %s173 = sand.u32 %s107, 1
        %s174 = scalar_lea.sflag [#allocation3], %s173
        %s175 = sand.u32 %s107, 1
        %s176 = smul.addr %s175, 128
        %s177 = scalar_lea.vmem [#allocation2], %s176
        %p178 = scmp.lt.s32.totalorder %s21, 3
        %s179 = scalar_select %p178, %s21, 3
        %s180 = smul.addr %s179, 452
        %s181 = smul.addr %s180, 4
        %s182 = scalar_lea.vmem %s0, %s181
        %s183 = smul.u32 16, %s22
        %s185 = smul.u32 %s22, 16
        %v186 = vld [vmem:[%s1] sm:$0xf]
        %v187 = vld [vmem:[%s2] sm:$0xff]
        %189 = vset.pattern.permute.xlu0 0
        %190 = vperm.xlu0 %189, %v187
        %v191 = vpop.permute.xlu0 %190
        %s193 = smul.u32 %s185, 2
        %s194 = smul.addr %s193, 4
        %s195 = scalar_lea.vmem %s182, %s194
        %v196 = vld [vmem:[%s195] sm:$0xff]
        %v197 = vunpack.c.l.bf16 %v196
        %v198 = vunpack.c.h.bf16 %v196
        %s199 = sadd.s32 %s185, 1
        %s200 = smul.u32 %s199, 2
        %s201 = smul.addr %s200, 4
        %s202 = scalar_lea.vmem %s182, %s201
        %v203 = vld [vmem:[%s202] sm:$0xff]
        %v204 = vunpack.c.l.bf16 %v203
        %v205 = vunpack.c.h.bf16 %v203
        %s206 = sadd.s32 %s185, 2
        %s207 = smul.u32 %s206, 2
        %s208 = smul.addr %s207, 4
        %s209 = scalar_lea.vmem %s182, %s208
        %v210 = vld [vmem:[%s209] sm:$0xff]
        %v211 = vunpack.c.l.bf16 %v210
        %v212 = vunpack.c.h.bf16 %v210
        %s213 = sadd.s32 %s185, 3
        %s214 = smul.u32 %s213, 2
        %s215 = smul.addr %s214, 4
        %s216 = scalar_lea.vmem %s182, %s215
        %v217 = vld [vmem:[%s216] sm:$0xff]
        %v218 = vunpack.c.l.bf16 %v217
        %v219 = vunpack.c.h.bf16 %v217
        %s220 = sadd.s32 %s185, 4
        %s221 = smul.u32 %s220, 2
        %s222 = smul.addr %s221, 4
        %s223 = scalar_lea.vmem %s182, %s222
        %v224 = vld [vmem:[%s223] sm:$0xff]
        %v225 = vunpack.c.l.bf16 %v224
        %v226 = vunpack.c.h.bf16 %v224
        %s227 = sadd.s32 %s185, 5
        %s228 = smul.u32 %s227, 2
        %s229 = smul.addr %s228, 4
        %s230 = scalar_lea.vmem %s182, %s229
        %v231 = vld [vmem:[%s230] sm:$0xff]
        %v232 = vunpack.c.l.bf16 %v231
        %v233 = vunpack.c.h.bf16 %v231
        %s234 = sadd.s32 %s185, 6
        %s235 = smul.u32 %s234, 2
        %s236 = smul.addr %s235, 4
        %s237 = scalar_lea.vmem %s182, %s236
        %v238 = vld [vmem:[%s237] sm:$0xff]
        %v239 = vunpack.c.l.bf16 %v238
        %v240 = vunpack.c.h.bf16 %v238
        %s241 = sadd.s32 %s185, 7
        %s242 = smul.u32 %s241, 2
        %s243 = smul.addr %s242, 4
        %s244 = scalar_lea.vmem %s182, %s243
        %v245 = vld [vmem:[%s244] sm:$0xff]
        %v246 = vunpack.c.l.bf16 %v245
        %v247 = vunpack.c.h.bf16 %v245
        %s248 = sadd.s32 %s185, 8
        %s249 = smul.u32 %s248, 2
        %s250 = smul.addr %s249, 4
        %s251 = scalar_lea.vmem %s182, %s250
        %v252 = vld [vmem:[%s251] sm:$0xff]
        %v253 = vunpack.c.l.bf16 %v252
        %v254 = vunpack.c.h.bf16 %v252
        %s255 = sadd.s32 %s185, 9
        %s256 = smul.u32 %s255, 2
        %s257 = smul.addr %s256, 4
        %s258 = scalar_lea.vmem %s182, %s257
        %v259 = vld [vmem:[%s258] sm:$0xff]
        %v260 = vunpack.c.l.bf16 %v259
        %v261 = vunpack.c.h.bf16 %v259
        %s262 = sadd.s32 %s185, 10
        %s263 = smul.u32 %s262, 2
        %s264 = smul.addr %s263, 4
        %s265 = scalar_lea.vmem %s182, %s264
        %v266 = vld [vmem:[%s265] sm:$0xff]
        %v267 = vunpack.c.l.bf16 %v266
        %v268 = vunpack.c.h.bf16 %v266
        %s269 = sadd.s32 %s185, 11
        %s270 = smul.u32 %s269, 2
        %s271 = smul.addr %s270, 4
        %s272 = scalar_lea.vmem %s182, %s271
        %v273 = vld [vmem:[%s272] sm:$0xff]
        %v274 = vunpack.c.l.bf16 %v273
        %v275 = vunpack.c.h.bf16 %v273
        %s276 = sadd.s32 %s185, 12
        %s277 = smul.u32 %s276, 2
        %s278 = smul.addr %s277, 4
        %s279 = scalar_lea.vmem %s182, %s278
        %v280 = vld [vmem:[%s279] sm:$0xff]
        %v281 = vunpack.c.l.bf16 %v280
        %v282 = vunpack.c.h.bf16 %v280
        %s283 = sadd.s32 %s185, 13
        %s284 = smul.u32 %s283, 2
        %s285 = smul.addr %s284, 4
        %s286 = scalar_lea.vmem %s182, %s285
        %v287 = vld [vmem:[%s286] sm:$0xff]
        %v288 = vunpack.c.l.bf16 %v287
        %v289 = vunpack.c.h.bf16 %v287
        %s290 = sadd.s32 %s185, 14
        %s291 = smul.u32 %s290, 2
        %s292 = smul.addr %s291, 4
        %s293 = scalar_lea.vmem %s182, %s292
        %v294 = vld [vmem:[%s293] sm:$0xff]
        %v295 = vunpack.c.l.bf16 %v294
        %v296 = vunpack.c.h.bf16 %v294
        %s297 = sadd.s32 %s185, 15
        %s298 = smul.u32 %s297, 2
        %s299 = smul.addr %s298, 4
        %s300 = scalar_lea.vmem %s182, %s299
        %v301 = vld [vmem:[%s300] sm:$0xff]
        %v302 = vunpack.c.l.bf16 %v301
        %v303 = vunpack.c.h.bf16 %v301
        %s304 = sadd.s32 %s185, 16
        %s305 = smul.u32 %s304, 2
        %s306 = smul.addr %s305, 4
        %s307 = scalar_lea.vmem %s182, %s306
        %v308 = vld [vmem:[%s307] sm:$0xff]
        %v309 = vunpack.c.l.bf16 %v308
        %v310 = vunpack.c.h.bf16 %v308
        %s311 = sadd.s32 %s185, 17
        %s312 = smul.u32 %s311, 2
        %s313 = smul.addr %s312, 4
        %s314 = scalar_lea.vmem %s182, %s313
        %v315 = vld [vmem:[%s314] sm:$0xff]
        %v316 = vunpack.c.l.bf16 %v315
        %v317 = vunpack.c.h.bf16 %v315
        %320 = vrot.lane.b32.xlu0 %v197, 127
        %v321 = vpop.permute.xlu0 %320
        %322 = vrot.lane.b32.xlu0 %v198, 127
        %v323 = vpop.permute.xlu0 %322
        %vm324 = vcmask 1039360
        %v325 = vsel %vm324, %v321, %v323
        %328 = vrot.lane.b32.xlu0 %v197, 126
        %v329 = vpop.permute.xlu0 %328
        %330 = vrot.lane.b32.xlu0 %v198, 126
        %v331 = vpop.permute.xlu0 %330
        %vm332 = vcmask 1031168
        %v333 = vsel %vm332, %v329, %v331
        %338 = vrot.lane.b32.xlu0 %v204, 127
        %v339 = vpop.permute.xlu0 %338
        %340 = vrot.lane.b32.xlu0 %v205, 127
        %v341 = vpop.permute.xlu0 %340
        %v342 = vsel %vm324, %v339, %v341
        %345 = vrot.lane.b32.xlu0 %v204, 126
        %v346 = vpop.permute.xlu0 %345
        %347 = vrot.lane.b32.xlu0 %v205, 126
        %v348 = vpop.permute.xlu0 %347
        %v349 = vsel %vm332, %v346, %v348
        %354 = vrot.lane.b32.xlu0 %v211, 127
        %v355 = vpop.permute.xlu0 %354
        %356 = vrot.lane.b32.xlu0 %v212, 127
        %v357 = vpop.permute.xlu0 %356
        %v358 = vsel %vm324, %v355, %v357
        %361 = vrot.lane.b32.xlu0 %v211, 126
        %v362 = vpop.permute.xlu0 %361
        %363 = vrot.lane.b32.xlu0 %v212, 126
        %v364 = vpop.permute.xlu0 %363
        %v365 = vsel %vm332, %v362, %v364
        %v368 = vpack.c.bf16 %v325, %v197
        %v369 = vpack.c.bf16 %v323, %v198
        %v370 = vpack.c.bf16 %v204, %v333
        %v371 = vpack.c.bf16 %v205, %v331
        %v372 = vpack.c.bf16 %v349, %v342
        %v373 = vpack.c.bf16 %v348, %v341
        %v374 = vpack.c.bf16 %v358, %v211
        %v375 = vpack.c.bf16 %v357, %v212
        %v376 = vpack.c.bf16 %v365, %v365
        %v377 = vpack.c.bf16 %v364, %v364
        %vm378 = vcmask 588800
        %v380 = vsel %vm378, %v186, 0
        %vm382 = vcmask 1043456
        %v384 = vsel %vm382, %v376, 0
        %v387 = vsel %vm382, %v377, 0
        %389 = vmatprep.subr.bf16.mxu0 0
        %390 = vmatpush1.bf16.msra.mxu0 0
        %391 = vmatprep.subr.bf16.mxu0 0
        %392 = vmatpush1.bf16.msra.mxu0 0
        %393 = vmatprep.subr.bf16.mxu0 0
        %394 = vmatpush1.bf16.msra.mxu0 0
        %395 = vmatprep.subr.bf16.mxu0 %v387
        %396 = vmatpush1.bf16.msra.mxu0 %v384
        %397 = vmatprep.subr.bf16.mxu0 %v375
        %398 = vmatpush1.bf16.msra.mxu0 %v374
        %399 = vmatprep.subr.bf16.mxu0 %v373
        %400 = vmatpush1.bf16.msra.mxu0 %v372
        %401 = vmatprep.subr.bf16.mxu0 %v371
        %402 = vmatpush1.bf16.msra.mxu0 %v370
        %403 = vmatprep.subr.bf16.mxu0 %v369
        %404 = vmatpush1.bf16.msra.mxu0 %v368
        %405 = vmatprep.subr.bf16.mxu0 0
        %406 = vmatpush2.bf16.msra.mxu0 0
        %407 = vmatprep.subr.bf16.mxu0 0
        %408 = vmatpush2.bf16.msra.mxu0 0
        %409 = vmatprep.subr.bf16.mxu0 0
        %410 = vmatpush2.bf16.msra.mxu0 0
        %411 = vmatprep.subr.bf16.mxu0 0
        %412 = vmatpush2.bf16.msra.mxu0 0
        %413 = vmatprep.subr.bf16.mxu0 0
        %414 = vmatpush2.bf16.msra.mxu0 0
        %415 = vmatprep.subr.bf16.mxu0 0
        %416 = vmatpush2.bf16.msra.mxu0 0
        %417 = vmatprep.subr.bf16.mxu0 0
        %418 = vmatpush2.bf16.msra.mxu0 0
        %419 = vmatprep.subr.bf16.mxu0 0
        %420 = vmatpush2.bf16.msra.mxu0 0
        %421 = vmatprep.mubr.bf16.mxu0 0
        %422 = vmatmul.mubr.bf16.gmra.mxu0 %v380
        %v423 = vpop.f32.mrf.mxu0
        %v424 = vadd.f32 %v191, %v423
        %v425 = vpop.f32.mrf.mxu0
        %v426 = vadd.f32 %v191, %v425
        %v427 = vpop.f32.mrf.mxu0
        %v428 = vpop.f32.mrf.mxu0
        %429 = vdwg.mxu0
        %v430 = vpack.c.bf16 %v424, %v424
        %v431 = vpack.c.bf16 %v426, %v426
        %v434 = vunpack.c.l.b16 %v430
        %v435 = vunpack.c.l.b16 %v431
        %v436 = vpack.c.b16 %v435, %v434
        %vm438 = vcmask 785412
        %vm439 = vmor %vm438, %vm382
        %440 = vst.msk [vmem:[%s177] sm:$0xff] %vm439, %v436
        %443 = vrot.lane.b32.xlu0 %v218, 127
        %v444 = vpop.permute.xlu0 %443
        %445 = vrot.lane.b32.xlu0 %v219, 127
        %v446 = vpop.permute.xlu0 %445
        %v447 = vsel %vm324, %v444, %v446
        %450 = vrot.lane.b32.xlu0 %v218, 126
        %v451 = vpop.permute.xlu0 %450
        %452 = vrot.lane.b32.xlu0 %v219, 126
        %v453 = vpop.permute.xlu0 %452
        %v454 = vsel %vm332, %v451, %v453
        %v457 = vpack.c.bf16 %v342, %v204
        %v458 = vpack.c.bf16 %v341, %v205
        %v459 = vpack.c.bf16 %v211, %v349
        %v460 = vpack.c.bf16 %v212, %v348
        %v461 = vpack.c.bf16 %v365, %v358
        %v462 = vpack.c.bf16 %v364, %v357
        %v463 = vpack.c.bf16 %v447, %v218
        %v464 = vpack.c.bf16 %v446, %v219
        %v465 = vpack.c.bf16 %v454, %v454
        %v466 = vpack.c.bf16 %v453, %v453
        %v468 = vsel %vm382, %v465, 0
        %v471 = vsel %vm382, %v466, 0
        %473 = vmatprep.subr.bf16.mxu0 0
        %474 = vmatpush1.bf16.msra.mxu0 0
        %475 = vmatprep.subr.bf16.mxu0 0
        %476 = vmatpush1.bf16.msra.mxu0 0
        %477 = vmatprep.subr.bf16.mxu0 0
        %478 = vmatpush1.bf16.msra.mxu0 0
        %479 = vmatprep.subr.bf16.mxu0 %v471
        %480 = vmatpush1.bf16.msra.mxu0 %v468
        %481 = vmatprep.subr.bf16.mxu0 %v464
        %482 = vmatpush1.bf16.msra.mxu0 %v463
        %483 = vmatprep.subr.bf16.mxu0 %v462
        %484 = vmatpush1.bf16.msra.mxu0 %v461
        %485 = vmatprep.subr.bf16.mxu0 %v460
        %486 = vmatpush1.bf16.msra.mxu0 %v459
        %487 = vmatprep.subr.bf16.mxu0 %v458
        %488 = vmatpush1.bf16.msra.mxu0 %v457
        %489 = vmatprep.subr.bf16.mxu0 0
        %490 = vmatpush2.bf16.msra.mxu0 0
        %491 = vmatprep.subr.bf16.mxu0 0
        %492 = vmatpush2.bf16.msra.mxu0 0
        %493 = vmatprep.subr.bf16.mxu0 0
        %494 = vmatpush2.bf16.msra.mxu0 0
        %495 = vmatprep.subr.bf16.mxu0 0
        %496 = vmatpush2.bf16.msra.mxu0 0
        %497 = vmatprep.subr.bf16.mxu0 0
        %498 = vmatpush2.bf16.msra.mxu0 0
        %499 = vmatprep.subr.bf16.mxu0 0
        %500 = vmatpush2.bf16.msra.mxu0 0
        %501 = vmatprep.subr.bf16.mxu0 0
        %502 = vmatpush2.bf16.msra.mxu0 0
        %503 = vmatprep.subr.bf16.mxu0 0
        %504 = vmatpush2.bf16.msra.mxu0 0
        %505 = vmatprep.mubr.bf16.mxu0 0
        %506 = vmatmul.mubr.bf16.gmra.mxu0 %v380
        %v507 = vpop.f32.mrf.mxu0
        %v508 = vadd.f32 %v191, %v507
        %v509 = vpop.f32.mrf.mxu0
        %v510 = vadd.f32 %v191, %v509
        %v511 = vpop.f32.mrf.mxu0
        %v512 = vpop.f32.mrf.mxu0
        %513 = vdwg.mxu0
        %v514 = vpack.c.bf16 %v508, %v508
        %v515 = vpack.c.bf16 %v510, %v510
        %v518 = vunpack.c.l.b16 %v514
        %v519 = vunpack.c.l.b16 %v515
        %v520 = vpack.c.b16 %v519, %v518
        %s522 = scalar_lea.vmem %s177, 8 [#allocation2]
        %523 = vst.msk [vmem:[%s522] sm:$0xff] %vm439, %v520
        %526 = vrot.lane.b32.xlu0 %v225, 127
        %v527 = vpop.permute.xlu0 %526
        %528 = vrot.lane.b32.xlu0 %v226, 127
        %v529 = vpop.permute.xlu0 %528
        %v530 = vsel %vm324, %v527, %v529
        %533 = vrot.lane.b32.xlu0 %v225, 126
        %v534 = vpop.permute.xlu0 %533
        %535 = vrot.lane.b32.xlu0 %v226, 126
        %v536 = vpop.permute.xlu0 %535
        %v537 = vsel %vm332, %v534, %v536
        %v540 = vpack.c.bf16 %v218, %v365
        %v541 = vpack.c.bf16 %v219, %v364
        %v542 = vpack.c.bf16 %v454, %v447
        %v543 = vpack.c.bf16 %v453, %v446
        %v544 = vpack.c.bf16 %v530, %v225
        %v545 = vpack.c.bf16 %v529, %v226
        %v546 = vpack.c.bf16 %v537, %v537
        %v547 = vpack.c.bf16 %v536, %v536
        %v549 = vsel %vm382, %v546, 0
        %v552 = vsel %vm382, %v547, 0
        %554 = vmatprep.subr.bf16.mxu0 0
        %555 = vmatpush1.bf16.msra.mxu0 0
        %556 = vmatprep.subr.bf16.mxu0 0
        %557 = vmatpush1.bf16.msra.mxu0 0
        %558 = vmatprep.subr.bf16.mxu0 0
        %559 = vmatpush1.bf16.msra.mxu0 0
        %560 = vmatprep.subr.bf16.mxu0 %v552
        %561 = vmatpush1.bf16.msra.mxu0 %v549
        %562 = vmatprep.subr.bf16.mxu0 %v545
        %563 = vmatpush1.bf16.msra.mxu0 %v544
        %564 = vmatprep.subr.bf16.mxu0 %v543
        %565 = vmatpush1.bf16.msra.mxu0 %v542
        %566 = vmatprep.subr.bf16.mxu0 %v541
        %567 = vmatpush1.bf16.msra.mxu0 %v540
        %568 = vmatprep.subr.bf16.mxu0 %v375
        %569 = vmatpush1.bf16.msra.mxu0 %v374
        %570 = vmatprep.subr.bf16.mxu0 0
        %571 = vmatpush2.bf16.msra.mxu0 0
        %572 = vmatprep.subr.bf16.mxu0 0
        %573 = vmatpush2.bf16.msra.mxu0 0
        %574 = vmatprep.subr.bf16.mxu0 0
        %575 = vmatpush2.bf16.msra.mxu0 0
        %576 = vmatprep.subr.bf16.mxu0 0
        %577 = vmatpush2.bf16.msra.mxu0 0
        %578 = vmatprep.subr.bf16.mxu0 0
        %579 = vmatpush2.bf16.msra.mxu0 0
        %580 = vmatprep.subr.bf16.mxu0 0
        %581 = vmatpush2.bf16.msra.mxu0 0
        %582 = vmatprep.subr.bf16.mxu0 0
        %583 = vmatpush2.bf16.msra.mxu0 0
        %584 = vmatprep.subr.bf16.mxu0 0
        %585 = vmatpush2.bf16.msra.mxu0 0
        %586 = vmatprep.mubr.bf16.mxu0 0
        %587 = vmatmul.mubr.bf16.gmra.mxu0 %v380
        %v588 = vpop.f32.mrf.mxu0
        %v589 = vadd.f32 %v191, %v588
        %v590 = vpop.f32.mrf.mxu0
        %v591 = vadd.f32 %v191, %v590
        %v592 = vpop.f32.mrf.mxu0
        %v593 = vpop.f32.mrf.mxu0
        %594 = vdwg.mxu0
        %v595 = vpack.c.bf16 %v589, %v589
        %v596 = vpack.c.bf16 %v591, %v591
        %v599 = vunpack.c.l.b16 %v595
        %v600 = vunpack.c.l.b16 %v596
        %v601 = vpack.c.b16 %v600, %v599
        %s603 = scalar_lea.vmem %s177, 16 [#allocation2]
        %604 = vst.msk [vmem:[%s603] sm:$0xff] %vm439, %v601
        %607 = vrot.lane.b32.xlu0 %v232, 127
        %v608 = vpop.permute.xlu0 %607
        %609 = vrot.lane.b32.xlu0 %v233, 127
        %v610 = vpop.permute.xlu0 %609
        %v611 = vsel %vm324, %v608, %v610
        %614 = vrot.lane.b32.xlu0 %v232, 126
        %v615 = vpop.permute.xlu0 %614
        %616 = vrot.lane.b32.xlu0 %v233, 126
        %v617 = vpop.permute.xlu0 %616
        %v618 = vsel %vm332, %v615, %v617
        %v621 = vpack.c.bf16 %v225, %v454
        %v622 = vpack.c.bf16 %v226, %v453
        %v623 = vpack.c.bf16 %v537, %v530
        %v624 = vpack.c.bf16 %v536, %v529
        %v625 = vpack.c.bf16 %v611, %v232
        %v626 = vpack.c.bf16 %v610, %v233
        %v627 = vpack.c.bf16 %v618, %v618
        %v628 = vpack.c.bf16 %v617, %v617
        %v630 = vsel %vm382, %v627, 0
        %v633 = vsel %vm382, %v628, 0
        %635 = vmatprep.subr.bf16.mxu0 0
        %636 = vmatpush1.bf16.msra.mxu0 0
        %637 = vmatprep.subr.bf16.mxu0 0
        %638 = vmatpush1.bf16.msra.mxu0 0
        %639 = vmatprep.subr.bf16.mxu0 0
        %640 = vmatpush1.bf16.msra.mxu0 0
        %641 = vmatprep.subr.bf16.mxu0 %v633
        %642 = vmatpush1.bf16.msra.mxu0 %v630
        %643 = vmatprep.subr.bf16.mxu0 %v626
        %644 = vmatpush1.bf16.msra.mxu0 %v625
        %645 = vmatprep.subr.bf16.mxu0 %v624
        %646 = vmatpush1.bf16.msra.mxu0 %v623
        %647 = vmatprep.subr.bf16.mxu0 %v622
        %648 = vmatpush1.bf16.msra.mxu0 %v621
        %649 = vmatprep.subr.bf16.mxu0 %v464
        %650 = vmatpush1.bf16.msra.mxu0 %v463
        %651 = vmatprep.subr.bf16.mxu0 0
        %652 = vmatpush2.bf16.msra.mxu0 0
        %653 = vmatprep.subr.bf16.mxu0 0
        %654 = vmatpush2.bf16.msra.mxu0 0
        %655 = vmatprep.subr.bf16.mxu0 0
        %656 = vmatpush2.bf16.msra.mxu0 0
        %657 = vmatprep.subr.bf16.mxu0 0
        %658 = vmatpush2.bf16.msra.mxu0 0
        %659 = vmatprep.subr.bf16.mxu0 0
        %660 = vmatpush2.bf16.msra.mxu0 0
        %661 = vmatprep.subr.bf16.mxu0 0
        %662 = vmatpush2.bf16.msra.mxu0 0
        %663 = vmatprep.subr.bf16.mxu0 0
        %664 = vmatpush2.bf16.msra.mxu0 0
        %665 = vmatprep.subr.bf16.mxu0 0
        %666 = vmatpush2.bf16.msra.mxu0 0
        %667 = vmatprep.mubr.bf16.mxu0 0
        %668 = vmatmul.mubr.bf16.gmra.mxu0 %v380
        %v669 = vpop.f32.mrf.mxu0
        %v670 = vadd.f32 %v191, %v669
        %v671 = vpop.f32.mrf.mxu0
        %v672 = vadd.f32 %v191, %v671
        %v673 = vpop.f32.mrf.mxu0
        %v674 = vpop.f32.mrf.mxu0
        %675 = vdwg.mxu0
        %v676 = vpack.c.bf16 %v670, %v670
        %v677 = vpack.c.bf16 %v672, %v672
        %v680 = vunpack.c.l.b16 %v676
        %v681 = vunpack.c.l.b16 %v677
        %v682 = vpack.c.b16 %v681, %v680
        %s684 = scalar_lea.vmem %s177, 24 [#allocation2]
        %685 = vst.msk [vmem:[%s684] sm:$0xff] %vm439, %v682
        %688 = vrot.lane.b32.xlu0 %v239, 127
        %v689 = vpop.permute.xlu0 %688
        %690 = vrot.lane.b32.xlu0 %v240, 127
        %v691 = vpop.permute.xlu0 %690
        %v692 = vsel %vm324, %v689, %v691
        %695 = vrot.lane.b32.xlu0 %v239, 126
        %v696 = vpop.permute.xlu0 %695
        %697 = vrot.lane.b32.xlu0 %v240, 126
        %v698 = vpop.permute.xlu0 %697
        %v699 = vsel %vm332, %v696, %v698
        %v702 = vpack.c.bf16 %v232, %v537
        %v703 = vpack.c.bf16 %v233, %v536
        %v704 = vpack.c.bf16 %v618, %v611
        %v705 = vpack.c.bf16 %v617, %v610
        %v706 = vpack.c.bf16 %v692, %v239
        %v707 = vpack.c.bf16 %v691, %v240
        %v708 = vpack.c.bf16 %v699, %v699
        %v709 = vpack.c.bf16 %v698, %v698
        %v711 = vsel %vm382, %v708, 0
        %v714 = vsel %vm382, %v709, 0
        %716 = vmatprep.subr.bf16.mxu0 0
        %717 = vmatpush1.bf16.msra.mxu0 0
        %718 = vmatprep.subr.bf16.mxu0 0
        %719 = vmatpush1.bf16.msra.mxu0 0
        %720 = vmatprep.subr.bf16.mxu0 0
        %721 = vmatpush1.bf16.msra.mxu0 0
        %722 = vmatprep.subr.bf16.mxu0 %v714
        %723 = vmatpush1.bf16.msra.mxu0 %v711
        %724 = vmatprep.subr.bf16.mxu0 %v707
        %725 = vmatpush1.bf16.msra.mxu0 %v706
        %726 = vmatprep.subr.bf16.mxu0 %v705
        %727 = vmatpush1.bf16.msra.mxu0 %v704
        %728 = vmatprep.subr.bf16.mxu0 %v703
        %729 = vmatpush1.bf16.msra.mxu0 %v702
        %730 = vmatprep.subr.bf16.mxu0 %v545
        %731 = vmatpush1.bf16.msra.mxu0 %v544
        %732 = vmatprep.subr.bf16.mxu0 0
        %733 = vmatpush2.bf16.msra.mxu0 0
        %734 = vmatprep.subr.bf16.mxu0 0
        %735 = vmatpush2.bf16.msra.mxu0 0
        %736 = vmatprep.subr.bf16.mxu0 0
        %737 = vmatpush2.bf16.msra.mxu0 0
        %738 = vmatprep.subr.bf16.mxu0 0
        %739 = vmatpush2.bf16.msra.mxu0 0
        %740 = vmatprep.subr.bf16.mxu0 0
        %741 = vmatpush2.bf16.msra.mxu0 0
        %742 = vmatprep.subr.bf16.mxu0 0
        %743 = vmatpush2.bf16.msra.mxu0 0
        %744 = vmatprep.subr.bf16.mxu0 0
        %745 = vmatpush2.bf16.msra.mxu0 0
        %746 = vmatprep.subr.bf16.mxu0 0
        %747 = vmatpush2.bf16.msra.mxu0 0
        %748 = vmatprep.mubr.bf16.mxu0 0
        %749 = vmatmul.mubr.bf16.gmra.mxu0 %v380
        %v750 = vpop.f32.mrf.mxu0
        %v751 = vadd.f32 %v191, %v750
        %v752 = vpop.f32.mrf.mxu0
        %v753 = vadd.f32 %v191, %v752
        %v754 = vpop.f32.mrf.mxu0
        %v755 = vpop.f32.mrf.mxu0
        %756 = vdwg.mxu0
        %v757 = vpack.c.bf16 %v751, %v751
        %v758 = vpack.c.bf16 %v753, %v753
        %v761 = vunpack.c.l.b16 %v757
        %v762 = vunpack.c.l.b16 %v758
        %v763 = vpack.c.b16 %v762, %v761
        %s765 = scalar_lea.vmem %s177, 32 [#allocation2]
        %766 = vst.msk [vmem:[%s765] sm:$0xff] %vm439, %v763
        %769 = vrot.lane.b32.xlu0 %v246, 127
        %v770 = vpop.permute.xlu0 %769
        %771 = vrot.lane.b32.xlu0 %v247, 127
        %v772 = vpop.permute.xlu0 %771
        %v773 = vsel %vm324, %v770, %v772
        %776 = vrot.lane.b32.xlu0 %v246, 126
        %v777 = vpop.permute.xlu0 %776
        %778 = vrot.lane.b32.xlu0 %v247, 126
        %v779 = vpop.permute.xlu0 %778
        %v780 = vsel %vm332, %v777, %v779
        %v783 = vpack.c.bf16 %v239, %v618
        %v784 = vpack.c.bf16 %v240, %v617
        %v785 = vpack.c.bf16 %v699, %v692
        %v786 = vpack.c.bf16 %v698, %v691
        %v787 = vpack.c.bf16 %v773, %v246
        %v788 = vpack.c.bf16 %v772, %v247
        %v789 = vpack.c.bf16 %v780, %v780
        %v790 = vpack.c.bf16 %v779, %v779
        %v792 = vsel %vm382, %v789, 0
        %v795 = vsel %vm382, %v790, 0
        %797 = vmatprep.subr.bf16.mxu0 0
        %798 = vmatpush1.bf16.msra.mxu0 0
        %799 = vmatprep.subr.bf16.mxu0 0
        %800 = vmatpush1.bf16.msra.mxu0 0
        %801 = vmatprep.subr.bf16.mxu0 0
        %802 = vmatpush1.bf16.msra.mxu0 0
        %803 = vmatprep.subr.bf16.mxu0 %v795
        %804 = vmatpush1.bf16.msra.mxu0 %v792
        %805 = vmatprep.subr.bf16.mxu0 %v788
        %806 = vmatpush1.bf16.msra.mxu0 %v787
        %807 = vmatprep.subr.bf16.mxu0 %v786
        %808 = vmatpush1.bf16.msra.mxu0 %v785
        %809 = vmatprep.subr.bf16.mxu0 %v784
        %810 = vmatpush1.bf16.msra.mxu0 %v783
        %811 = vmatprep.subr.bf16.mxu0 %v626
        %812 = vmatpush1.bf16.msra.mxu0 %v625
        %813 = vmatprep.subr.bf16.mxu0 0
        %814 = vmatpush2.bf16.msra.mxu0 0
        %815 = vmatprep.subr.bf16.mxu0 0
        %816 = vmatpush2.bf16.msra.mxu0 0
        %817 = vmatprep.subr.bf16.mxu0 0
        %818 = vmatpush2.bf16.msra.mxu0 0
        %819 = vmatprep.subr.bf16.mxu0 0
        %820 = vmatpush2.bf16.msra.mxu0 0
        %821 = vmatprep.subr.bf16.mxu0 0
        %822 = vmatpush2.bf16.msra.mxu0 0
        %823 = vmatprep.subr.bf16.mxu0 0
        %824 = vmatpush2.bf16.msra.mxu0 0
        %825 = vmatprep.subr.bf16.mxu0 0
        %826 = vmatpush2.bf16.msra.mxu0 0
        %827 = vmatprep.subr.bf16.mxu0 0
        %828 = vmatpush2.bf16.msra.mxu0 0
        %829 = vmatprep.mubr.bf16.mxu0 0
        %830 = vmatmul.mubr.bf16.gmra.mxu0 %v380
        %v831 = vpop.f32.mrf.mxu0
        %v832 = vadd.f32 %v191, %v831
        %v833 = vpop.f32.mrf.mxu0
        %v834 = vadd.f32 %v191, %v833
        %v835 = vpop.f32.mrf.mxu0
        %v836 = vpop.f32.mrf.mxu0
        %837 = vdwg.mxu0
        %v838 = vpack.c.bf16 %v832, %v832
        %v839 = vpack.c.bf16 %v834, %v834
        %v842 = vunpack.c.l.b16 %v838
        %v843 = vunpack.c.l.b16 %v839
        %v844 = vpack.c.b16 %v843, %v842
        %s846 = scalar_lea.vmem %s177, 40 [#allocation2]
        %847 = vst.msk [vmem:[%s846] sm:$0xff] %vm439, %v844
        %850 = vrot.lane.b32.xlu0 %v253, 127
        %v851 = vpop.permute.xlu0 %850
        %852 = vrot.lane.b32.xlu0 %v254, 127
        %v853 = vpop.permute.xlu0 %852
        %v854 = vsel %vm324, %v851, %v853
        %857 = vrot.lane.b32.xlu0 %v253, 126
        %v858 = vpop.permute.xlu0 %857
        %859 = vrot.lane.b32.xlu0 %v254, 126
        %v860 = vpop.permute.xlu0 %859
        %v861 = vsel %vm332, %v858, %v860
        %v864 = vpack.c.bf16 %v246, %v699
        %v865 = vpack.c.bf16 %v247, %v698
        %v866 = vpack.c.bf16 %v780, %v773
        %v867 = vpack.c.bf16 %v779, %v772
        %v868 = vpack.c.bf16 %v854, %v253
        %v869 = vpack.c.bf16 %v853, %v254
        %v870 = vpack.c.bf16 %v861, %v861
        %v871 = vpack.c.bf16 %v860, %v860
        %v873 = vsel %vm382, %v870, 0
        %v876 = vsel %vm382, %v871, 0
        %878 = vmatprep.subr.bf16.mxu0 0
        %879 = vmatpush1.bf16.msra.mxu0 0
        %880 = vmatprep.subr.bf16.mxu0 0
        %881 = vmatpush1.bf16.msra.mxu0 0
        %882 = vmatprep.subr.bf16.mxu0 0
        %883 = vmatpush1.bf16.msra.mxu0 0
        %884 = vmatprep.subr.bf16.mxu0 %v876
        %885 = vmatpush1.bf16.msra.mxu0 %v873
        %886 = vmatprep.subr.bf16.mxu0 %v869
        %887 = vmatpush1.bf16.msra.mxu0 %v868
        %888 = vmatprep.subr.bf16.mxu0 %v867
        %889 = vmatpush1.bf16.msra.mxu0 %v866
        %890 = vmatprep.subr.bf16.mxu0 %v865
        %891 = vmatpush1.bf16.msra.mxu0 %v864
        %892 = vmatprep.subr.bf16.mxu0 %v707
        %893 = vmatpush1.bf16.msra.mxu0 %v706
        %894 = vmatprep.subr.bf16.mxu0 0
        %895 = vmatpush2.bf16.msra.mxu0 0
        %896 = vmatprep.subr.bf16.mxu0 0
        %897 = vmatpush2.bf16.msra.mxu0 0
        %898 = vmatprep.subr.bf16.mxu0 0
        %899 = vmatpush2.bf16.msra.mxu0 0
        %900 = vmatprep.subr.bf16.mxu0 0
        %901 = vmatpush2.bf16.msra.mxu0 0
        %902 = vmatprep.subr.bf16.mxu0 0
        %903 = vmatpush2.bf16.msra.mxu0 0
        %904 = vmatprep.subr.bf16.mxu0 0
        %905 = vmatpush2.bf16.msra.mxu0 0
        %906 = vmatprep.subr.bf16.mxu0 0
        %907 = vmatpush2.bf16.msra.mxu0 0
        %908 = vmatprep.subr.bf16.mxu0 0
        %909 = vmatpush2.bf16.msra.mxu0 0
        %910 = vmatprep.mubr.bf16.mxu0 0
        %911 = vmatmul.mubr.bf16.gmra.mxu0 %v380
        %v912 = vpop.f32.mrf.mxu0
        %v913 = vadd.f32 %v191, %v912
        %v914 = vpop.f32.mrf.mxu0
        %v915 = vadd.f32 %v191, %v914
        %v916 = vpop.f32.mrf.mxu0
        %v917 = vpop.f32.mrf.mxu0
        %918 = vdwg.mxu0
        %v919 = vpack.c.bf16 %v913, %v913
        %v920 = vpack.c.bf16 %v915, %v915
        %v923 = vunpack.c.l.b16 %v919
        %v924 = vunpack.c.l.b16 %v920
        %v925 = vpack.c.b16 %v924, %v923
        %s927 = scalar_lea.vmem %s177, 48 [#allocation2]
        %928 = vst.msk [vmem:[%s927] sm:$0xff] %vm439, %v925
        %931 = vrot.lane.b32.xlu0 %v260, 127
        %v932 = vpop.permute.xlu0 %931
        %933 = vrot.lane.b32.xlu0 %v261, 127
        %v934 = vpop.permute.xlu0 %933
        %v935 = vsel %vm324, %v932, %v934
        %938 = vrot.lane.b32.xlu0 %v260, 126
        %v939 = vpop.permute.xlu0 %938
        %940 = vrot.lane.b32.xlu0 %v261, 126
        %v941 = vpop.permute.xlu0 %940
        %v942 = vsel %vm332, %v939, %v941
        %v945 = vpack.c.bf16 %v253, %v780
        %v946 = vpack.c.bf16 %v254, %v779
        %v947 = vpack.c.bf16 %v861, %v854
        %v948 = vpack.c.bf16 %v860, %v853
        %v949 = vpack.c.bf16 %v935, %v260
        %v950 = vpack.c.bf16 %v934, %v261
        %v951 = vpack.c.bf16 %v942, %v942
        %v952 = vpack.c.bf16 %v941, %v941
        %v954 = vsel %vm382, %v951, 0
        %v957 = vsel %vm382, %v952, 0
        %959 = vmatprep.subr.bf16.mxu0 0
        %960 = vmatpush1.bf16.msra.mxu0 0
        %961 = vmatprep.subr.bf16.mxu0 0
        %962 = vmatpush1.bf16.msra.mxu0 0
        %963 = vmatprep.subr.bf16.mxu0 0
        %964 = vmatpush1.bf16.msra.mxu0 0
        %965 = vmatprep.subr.bf16.mxu0 %v957
        %966 = vmatpush1.bf16.msra.mxu0 %v954
        %967 = vmatprep.subr.bf16.mxu0 %v950
        %968 = vmatpush1.bf16.msra.mxu0 %v949
        %969 = vmatprep.subr.bf16.mxu0 %v948
        %970 = vmatpush1.bf16.msra.mxu0 %v947
        %971 = vmatprep.subr.bf16.mxu0 %v946
        %972 = vmatpush1.bf16.msra.mxu0 %v945
        %973 = vmatprep.subr.bf16.mxu0 %v788
        %974 = vmatpush1.bf16.msra.mxu0 %v787
        %975 = vmatprep.subr.bf16.mxu0 0
        %976 = vmatpush2.bf16.msra.mxu0 0
        %977 = vmatprep.subr.bf16.mxu0 0
        %978 = vmatpush2.bf16.msra.mxu0 0
        %979 = vmatprep.subr.bf16.mxu0 0
        %980 = vmatpush2.bf16.msra.mxu0 0
        %981 = vmatprep.subr.bf16.mxu0 0
        %982 = vmatpush2.bf16.msra.mxu0 0
        %983 = vmatprep.subr.bf16.mxu0 0
        %984 = vmatpush2.bf16.msra.mxu0 0
        %985 = vmatprep.subr.bf16.mxu0 0
        %986 = vmatpush2.bf16.msra.mxu0 0
        %987 = vmatprep.subr.bf16.mxu0 0
        %988 = vmatpush2.bf16.msra.mxu0 0
        %989 = vmatprep.subr.bf16.mxu0 0
        %990 = vmatpush2.bf16.msra.mxu0 0
        %991 = vmatprep.mubr.bf16.mxu0 0
        %992 = vmatmul.mubr.bf16.gmra.mxu0 %v380
        %v993 = vpop.f32.mrf.mxu0
        %v994 = vadd.f32 %v191, %v993
        %v995 = vpop.f32.mrf.mxu0
        %v996 = vadd.f32 %v191, %v995
        %v997 = vpop.f32.mrf.mxu0
        %v998 = vpop.f32.mrf.mxu0
        %999 = vdwg.mxu0
        %v1000 = vpack.c.bf16 %v994, %v994
        %v1001 = vpack.c.bf16 %v996, %v996
        %v1004 = vunpack.c.l.b16 %v1000
        %v1005 = vunpack.c.l.b16 %v1001
        %v1006 = vpack.c.b16 %v1005, %v1004
        %s1008 = scalar_lea.vmem %s177, 56 [#allocation2]
        %1009 = vst.msk [vmem:[%s1008] sm:$0xff] %vm439, %v1006
        %1012 = vrot.lane.b32.xlu0 %v267, 127
        %v1013 = vpop.permute.xlu0 %1012
        %1014 = vrot.lane.b32.xlu0 %v268, 127
        %v1015 = vpop.permute.xlu0 %1014
        %v1016 = vsel %vm324, %v1013, %v1015
        %1019 = vrot.lane.b32.xlu0 %v267, 126
        %v1020 = vpop.permute.xlu0 %1019
        %1021 = vrot.lane.b32.xlu0 %v268, 126
        %v1022 = vpop.permute.xlu0 %1021
        %v1023 = vsel %vm332, %v1020, %v1022
        %v1026 = vpack.c.bf16 %v260, %v861
        %v1027 = vpack.c.bf16 %v261, %v860
        %v1028 = vpack.c.bf16 %v942, %v935
        %v1029 = vpack.c.bf16 %v941, %v934
        %v1030 = vpack.c.bf16 %v1016, %v267
        %v1031 = vpack.c.bf16 %v1015, %v268
        %v1032 = vpack.c.bf16 %v1023, %v1023
        %v1033 = vpack.c.bf16 %v1022, %v1022
        %v1035 = vsel %vm382, %v1032, 0
        %v1038 = vsel %vm382, %v1033, 0
        %1040 = vmatprep.subr.bf16.mxu0 0
        %1041 = vmatpush1.bf16.msra.mxu0 0
        %1042 = vmatprep.subr.bf16.mxu0 0
        %1043 = vmatpush1.bf16.msra.mxu0 0
        %1044 = vmatprep.subr.bf16.mxu0 0
        %1045 = vmatpush1.bf16.msra.mxu0 0
        %1046 = vmatprep.subr.bf16.mxu0 %v1038
        %1047 = vmatpush1.bf16.msra.mxu0 %v1035
        %1048 = vmatprep.subr.bf16.mxu0 %v1031
        %1049 = vmatpush1.bf16.msra.mxu0 %v1030
        %1050 = vmatprep.subr.bf16.mxu0 %v1029
        %1051 = vmatpush1.bf16.msra.mxu0 %v1028
        %1052 = vmatprep.subr.bf16.mxu0 %v1027
        %1053 = vmatpush1.bf16.msra.mxu0 %v1026
        %1054 = vmatprep.subr.bf16.mxu0 %v869
        %1055 = vmatpush1.bf16.msra.mxu0 %v868
        %1056 = vmatprep.subr.bf16.mxu0 0
        %1057 = vmatpush2.bf16.msra.mxu0 0
        %1058 = vmatprep.subr.bf16.mxu0 0
        %1059 = vmatpush2.bf16.msra.mxu0 0
        %1060 = vmatprep.subr.bf16.mxu0 0
        %1061 = vmatpush2.bf16.msra.mxu0 0
        %1062 = vmatprep.subr.bf16.mxu0 0
        %1063 = vmatpush2.bf16.msra.mxu0 0
        %1064 = vmatprep.subr.bf16.mxu0 0
        %1065 = vmatpush2.bf16.msra.mxu0 0
        %1066 = vmatprep.subr.bf16.mxu0 0
        %1067 = vmatpush2.bf16.msra.mxu0 0
        %1068 = vmatprep.subr.bf16.mxu0 0
        %1069 = vmatpush2.bf16.msra.mxu0 0
        %1070 = vmatprep.subr.bf16.mxu0 0
        %1071 = vmatpush2.bf16.msra.mxu0 0
        %1072 = vmatprep.mubr.bf16.mxu0 0
        %1073 = vmatmul.mubr.bf16.gmra.mxu0 %v380
        %v1074 = vpop.f32.mrf.mxu0
        %v1075 = vadd.f32 %v191, %v1074
        %v1076 = vpop.f32.mrf.mxu0
        %v1077 = vadd.f32 %v191, %v1076
        %v1078 = vpop.f32.mrf.mxu0
        %v1079 = vpop.f32.mrf.mxu0
        %1080 = vdwg.mxu0
        %v1081 = vpack.c.bf16 %v1075, %v1075
        %v1082 = vpack.c.bf16 %v1077, %v1077
        %v1085 = vunpack.c.l.b16 %v1081
        %v1086 = vunpack.c.l.b16 %v1082
        %v1087 = vpack.c.b16 %v1086, %v1085
        %s1089 = scalar_lea.vmem %s177, 64 [#allocation2]
        %1090 = vst.msk [vmem:[%s1089] sm:$0xff] %vm439, %v1087
        %1093 = vrot.lane.b32.xlu0 %v274, 127
        %v1094 = vpop.permute.xlu0 %1093
        %1095 = vrot.lane.b32.xlu0 %v275, 127
        %v1096 = vpop.permute.xlu0 %1095
        %v1097 = vsel %vm324, %v1094, %v1096
        %1100 = vrot.lane.b32.xlu0 %v274, 126
        %v1101 = vpop.permute.xlu0 %1100
        %1102 = vrot.lane.b32.xlu0 %v275, 126
        %v1103 = vpop.permute.xlu0 %1102
        %v1104 = vsel %vm332, %v1101, %v1103
        %v1107 = vpack.c.bf16 %v267, %v942
        %v1108 = vpack.c.bf16 %v268, %v941
        %v1109 = vpack.c.bf16 %v1023, %v1016
        %v1110 = vpack.c.bf16 %v1022, %v1015
        %v1111 = vpack.c.bf16 %v1097, %v274
        %v1112 = vpack.c.bf16 %v1096, %v275
        %v1113 = vpack.c.bf16 %v1104, %v1104
        %v1114 = vpack.c.bf16 %v1103, %v1103
        %v1116 = vsel %vm382, %v1113, 0
        %v1119 = vsel %vm382, %v1114, 0
        %1121 = vmatprep.subr.bf16.mxu0 0
        %1122 = vmatpush1.bf16.msra.mxu0 0
        %1123 = vmatprep.subr.bf16.mxu0 0
        %1124 = vmatpush1.bf16.msra.mxu0 0
        %1125 = vmatprep.subr.bf16.mxu0 0
        %1126 = vmatpush1.bf16.msra.mxu0 0
        %1127 = vmatprep.subr.bf16.mxu0 %v1119
        %1128 = vmatpush1.bf16.msra.mxu0 %v1116
        %1129 = vmatprep.subr.bf16.mxu0 %v1112
        %1130 = vmatpush1.bf16.msra.mxu0 %v1111
        %1131 = vmatprep.subr.bf16.mxu0 %v1110
        %1132 = vmatpush1.bf16.msra.mxu0 %v1109
        %1133 = vmatprep.subr.bf16.mxu0 %v1108
        %1134 = vmatpush1.bf16.msra.mxu0 %v1107
        %1135 = vmatprep.subr.bf16.mxu0 %v950
        %1136 = vmatpush1.bf16.msra.mxu0 %v949
        %1137 = vmatprep.subr.bf16.mxu0 0
        %1138 = vmatpush2.bf16.msra.mxu0 0
        %1139 = vmatprep.subr.bf16.mxu0 0
        %1140 = vmatpush2.bf16.msra.mxu0 0
        %1141 = vmatprep.subr.bf16.mxu0 0
        %1142 = vmatpush2.bf16.msra.mxu0 0
        %1143 = vmatprep.subr.bf16.mxu0 0
        %1144 = vmatpush2.bf16.msra.mxu0 0
        %1145 = vmatprep.subr.bf16.mxu0 0
        %1146 = vmatpush2.bf16.msra.mxu0 0
        %1147 = vmatprep.subr.bf16.mxu0 0
        %1148 = vmatpush2.bf16.msra.mxu0 0
        %1149 = vmatprep.subr.bf16.mxu0 0
        %1150 = vmatpush2.bf16.msra.mxu0 0
        %1151 = vmatprep.subr.bf16.mxu0 0
        %1152 = vmatpush2.bf16.msra.mxu0 0
        %1153 = vmatprep.mubr.bf16.mxu0 0
        %1154 = vmatmul.mubr.bf16.gmra.mxu0 %v380
        %v1155 = vpop.f32.mrf.mxu0
        %v1156 = vadd.f32 %v191, %v1155
        %v1157 = vpop.f32.mrf.mxu0
        %v1158 = vadd.f32 %v191, %v1157
        %v1159 = vpop.f32.mrf.mxu0
        %v1160 = vpop.f32.mrf.mxu0
        %1161 = vdwg.mxu0
        %v1162 = vpack.c.bf16 %v1156, %v1156
        %v1163 = vpack.c.bf16 %v1158, %v1158
        %v1166 = vunpack.c.l.b16 %v1162
        %v1167 = vunpack.c.l.b16 %v1163
        %v1168 = vpack.c.b16 %v1167, %v1166
        %s1170 = scalar_lea.vmem %s177, 72 [#allocation2]
        %1171 = vst.msk [vmem:[%s1170] sm:$0xff] %vm439, %v1168
        %1174 = vrot.lane.b32.xlu0 %v281, 127
        %v1175 = vpop.permute.xlu0 %1174
        %1176 = vrot.lane.b32.xlu0 %v282, 127
        %v1177 = vpop.permute.xlu0 %1176
        %v1178 = vsel %vm324, %v1175, %v1177
        %1181 = vrot.lane.b32.xlu0 %v281, 126
        %v1182 = vpop.permute.xlu0 %1181
        %1183 = vrot.lane.b32.xlu0 %v282, 126
        %v1184 = vpop.permute.xlu0 %1183
        %v1185 = vsel %vm332, %v1182, %v1184
        %v1188 = vpack.c.bf16 %v274, %v1023
        %v1189 = vpack.c.bf16 %v275, %v1022
        %v1190 = vpack.c.bf16 %v1104, %v1097
        %v1191 = vpack.c.bf16 %v1103, %v1096
        %v1192 = vpack.c.bf16 %v1178, %v281
        %v1193 = vpack.c.bf16 %v1177, %v282
        %v1194 = vpack.c.bf16 %v1185, %v1185
        %v1195 = vpack.c.bf16 %v1184, %v1184
        %v1197 = vsel %vm382, %v1194, 0
        %v1200 = vsel %vm382, %v1195, 0
        %1202 = vmatprep.subr.bf16.mxu0 0
        %1203 = vmatpush1.bf16.msra.mxu0 0
        %1204 = vmatprep.subr.bf16.mxu0 0
        %1205 = vmatpush1.bf16.msra.mxu0 0
        %1206 = vmatprep.subr.bf16.mxu0 0
        %1207 = vmatpush1.bf16.msra.mxu0 0
        %1208 = vmatprep.subr.bf16.mxu0 %v1200
        %1209 = vmatpush1.bf16.msra.mxu0 %v1197
        %1210 = vmatprep.subr.bf16.mxu0 %v1193
        %1211 = vmatpush1.bf16.msra.mxu0 %v1192
        %1212 = vmatprep.subr.bf16.mxu0 %v1191
        %1213 = vmatpush1.bf16.msra.mxu0 %v1190
        %1214 = vmatprep.subr.bf16.mxu0 %v1189
        %1215 = vmatpush1.bf16.msra.mxu0 %v1188
        %1216 = vmatprep.subr.bf16.mxu0 %v1031
        %1217 = vmatpush1.bf16.msra.mxu0 %v1030
        %1218 = vmatprep.subr.bf16.mxu0 0
        %1219 = vmatpush2.bf16.msra.mxu0 0
        %1220 = vmatprep.subr.bf16.mxu0 0
        %1221 = vmatpush2.bf16.msra.mxu0 0
        %1222 = vmatprep.subr.bf16.mxu0 0
        %1223 = vmatpush2.bf16.msra.mxu0 0
        %1224 = vmatprep.subr.bf16.mxu0 0
        %1225 = vmatpush2.bf16.msra.mxu0 0
        %1226 = vmatprep.subr.bf16.mxu0 0
        %1227 = vmatpush2.bf16.msra.mxu0 0
        %1228 = vmatprep.subr.bf16.mxu0 0
        %1229 = vmatpush2.bf16.msra.mxu0 0
        %1230 = vmatprep.subr.bf16.mxu0 0
        %1231 = vmatpush2.bf16.msra.mxu0 0
        %1232 = vmatprep.subr.bf16.mxu0 0
        %1233 = vmatpush2.bf16.msra.mxu0 0
        %1234 = vmatprep.mubr.bf16.mxu0 0
        %1235 = vmatmul.mubr.bf16.gmra.mxu0 %v380
        %v1236 = vpop.f32.mrf.mxu0
        %v1237 = vadd.f32 %v191, %v1236
        %v1238 = vpop.f32.mrf.mxu0
        %v1239 = vadd.f32 %v191, %v1238
        %v1240 = vpop.f32.mrf.mxu0
        %v1241 = vpop.f32.mrf.mxu0
        %1242 = vdwg.mxu0
        %v1243 = vpack.c.bf16 %v1237, %v1237
        %v1244 = vpack.c.bf16 %v1239, %v1239
        %v1247 = vunpack.c.l.b16 %v1243
        %v1248 = vunpack.c.l.b16 %v1244
        %v1249 = vpack.c.b16 %v1248, %v1247
        %s1251 = scalar_lea.vmem %s177, 80 [#allocation2]
        %1252 = vst.msk [vmem:[%s1251] sm:$0xff] %vm439, %v1249
        %1255 = vrot.lane.b32.xlu0 %v288, 127
        %v1256 = vpop.permute.xlu0 %1255
        %1257 = vrot.lane.b32.xlu0 %v289, 127
        %v1258 = vpop.permute.xlu0 %1257
        %v1259 = vsel %vm324, %v1256, %v1258
        %1262 = vrot.lane.b32.xlu0 %v288, 126
        %v1263 = vpop.permute.xlu0 %1262
        %1264 = vrot.lane.b32.xlu0 %v289, 126
        %v1265 = vpop.permute.xlu0 %1264
        %v1266 = vsel %vm332, %v1263, %v1265
        %v1269 = vpack.c.bf16 %v281, %v1104
        %v1270 = vpack.c.bf16 %v282, %v1103
        %v1271 = vpack.c.bf16 %v1185, %v1178
        %v1272 = vpack.c.bf16 %v1184, %v1177
        %v1273 = vpack.c.bf16 %v1259, %v288
        %v1274 = vpack.c.bf16 %v1258, %v289
        %v1275 = vpack.c.bf16 %v1266, %v1266
        %v1276 = vpack.c.bf16 %v1265, %v1265
        %v1278 = vsel %vm382, %v1275, 0
        %v1281 = vsel %vm382, %v1276, 0
        %1283 = vmatprep.subr.bf16.mxu0 0
        %1284 = vmatpush1.bf16.msra.mxu0 0
        %1285 = vmatprep.subr.bf16.mxu0 0
        %1286 = vmatpush1.bf16.msra.mxu0 0
        %1287 = vmatprep.subr.bf16.mxu0 0
        %1288 = vmatpush1.bf16.msra.mxu0 0
        %1289 = vmatprep.subr.bf16.mxu0 %v1281
        %1290 = vmatpush1.bf16.msra.mxu0 %v1278
        %1291 = vmatprep.subr.bf16.mxu0 %v1274
        %1292 = vmatpush1.bf16.msra.mxu0 %v1273
        %1293 = vmatprep.subr.bf16.mxu0 %v1272
        %1294 = vmatpush1.bf16.msra.mxu0 %v1271
        %1295 = vmatprep.subr.bf16.mxu0 %v1270
        %1296 = vmatpush1.bf16.msra.mxu0 %v1269
        %1297 = vmatprep.subr.bf16.mxu0 %v1112
        %1298 = vmatpush1.bf16.msra.mxu0 %v1111
        %1299 = vmatprep.subr.bf16.mxu0 0
        %1300 = vmatpush2.bf16.msra.mxu0 0
        %1301 = vmatprep.subr.bf16.mxu0 0
        %1302 = vmatpush2.bf16.msra.mxu0 0
        %1303 = vmatprep.subr.bf16.mxu0 0
        %1304 = vmatpush2.bf16.msra.mxu0 0
        %1305 = vmatprep.subr.bf16.mxu0 0
        %1306 = vmatpush2.bf16.msra.mxu0 0
        %1307 = vmatprep.subr.bf16.mxu0 0
        %1308 = vmatpush2.bf16.msra.mxu0 0
        %1309 = vmatprep.subr.bf16.mxu0 0
        %1310 = vmatpush2.bf16.msra.mxu0 0
        %1311 = vmatprep.subr.bf16.mxu0 0
        %1312 = vmatpush2.bf16.msra.mxu0 0
        %1313 = vmatprep.subr.bf16.mxu0 0
        %1314 = vmatpush2.bf16.msra.mxu0 0
        %1315 = vmatprep.mubr.bf16.mxu0 0
        %1316 = vmatmul.mubr.bf16.gmra.mxu0 %v380
        %v1317 = vpop.f32.mrf.mxu0
        %v1318 = vadd.f32 %v191, %v1317
        %v1319 = vpop.f32.mrf.mxu0
        %v1320 = vadd.f32 %v191, %v1319
        %v1321 = vpop.f32.mrf.mxu0
        %v1322 = vpop.f32.mrf.mxu0
        %1323 = vdwg.mxu0
        %v1324 = vpack.c.bf16 %v1318, %v1318
        %v1325 = vpack.c.bf16 %v1320, %v1320
        %v1328 = vunpack.c.l.b16 %v1324
        %v1329 = vunpack.c.l.b16 %v1325
        %v1330 = vpack.c.b16 %v1329, %v1328
        %s1332 = scalar_lea.vmem %s177, 88 [#allocation2]
        %1333 = vst.msk [vmem:[%s1332] sm:$0xff] %vm439, %v1330
        %1336 = vrot.lane.b32.xlu0 %v295, 127
        %v1337 = vpop.permute.xlu0 %1336
        %1338 = vrot.lane.b32.xlu0 %v296, 127
        %v1339 = vpop.permute.xlu0 %1338
        %v1340 = vsel %vm324, %v1337, %v1339
        %1343 = vrot.lane.b32.xlu0 %v295, 126
        %v1344 = vpop.permute.xlu0 %1343
        %1345 = vrot.lane.b32.xlu0 %v296, 126
        %v1346 = vpop.permute.xlu0 %1345
        %v1347 = vsel %vm332, %v1344, %v1346
        %v1350 = vpack.c.bf16 %v288, %v1185
        %v1351 = vpack.c.bf16 %v289, %v1184
        %v1352 = vpack.c.bf16 %v1266, %v1259
        %v1353 = vpack.c.bf16 %v1265, %v1258
        %v1354 = vpack.c.bf16 %v1340, %v295
        %v1355 = vpack.c.bf16 %v1339, %v296
        %v1356 = vpack.c.bf16 %v1347, %v1347
        %v1357 = vpack.c.bf16 %v1346, %v1346
        %v1359 = vsel %vm382, %v1356, 0
        %v1362 = vsel %vm382, %v1357, 0
        %1364 = vmatprep.subr.bf16.mxu0 0
        %1365 = vmatpush1.bf16.msra.mxu0 0
        %1366 = vmatprep.subr.bf16.mxu0 0
        %1367 = vmatpush1.bf16.msra.mxu0 0
        %1368 = vmatprep.subr.bf16.mxu0 0
        %1369 = vmatpush1.bf16.msra.mxu0 0
        %1370 = vmatprep.subr.bf16.mxu0 %v1362
        %1371 = vmatpush1.bf16.msra.mxu0 %v1359
        %1372 = vmatprep.subr.bf16.mxu0 %v1355
        %1373 = vmatpush1.bf16.msra.mxu0 %v1354
        %1374 = vmatprep.subr.bf16.mxu0 %v1353
        %1375 = vmatpush1.bf16.msra.mxu0 %v1352
        %1376 = vmatprep.subr.bf16.mxu0 %v1351
        %1377 = vmatpush1.bf16.msra.mxu0 %v1350
        %1378 = vmatprep.subr.bf16.mxu0 %v1193
        %1379 = vmatpush1.bf16.msra.mxu0 %v1192
        %1380 = vmatprep.subr.bf16.mxu0 0
        %1381 = vmatpush2.bf16.msra.mxu0 0
        %1382 = vmatprep.subr.bf16.mxu0 0
        %1383 = vmatpush2.bf16.msra.mxu0 0
        %1384 = vmatprep.subr.bf16.mxu0 0
        %1385 = vmatpush2.bf16.msra.mxu0 0
        %1386 = vmatprep.subr.bf16.mxu0 0
        %1387 = vmatpush2.bf16.msra.mxu0 0
        %1388 = vmatprep.subr.bf16.mxu0 0
        %1389 = vmatpush2.bf16.msra.mxu0 0
        %1390 = vmatprep.subr.bf16.mxu0 0
        %1391 = vmatpush2.bf16.msra.mxu0 0
        %1392 = vmatprep.subr.bf16.mxu0 0
        %1393 = vmatpush2.bf16.msra.mxu0 0
        %1394 = vmatprep.subr.bf16.mxu0 0
        %1395 = vmatpush2.bf16.msra.mxu0 0
        %1396 = vmatprep.mubr.bf16.mxu0 0
        %1397 = vmatmul.mubr.bf16.gmra.mxu0 %v380
        %v1398 = vpop.f32.mrf.mxu0
        %v1399 = vadd.f32 %v191, %v1398
        %v1400 = vpop.f32.mrf.mxu0
        %v1401 = vadd.f32 %v191, %v1400
        %v1402 = vpop.f32.mrf.mxu0
        %v1403 = vpop.f32.mrf.mxu0
        %1404 = vdwg.mxu0
        %v1405 = vpack.c.bf16 %v1399, %v1399
        %v1406 = vpack.c.bf16 %v1401, %v1401
        %v1409 = vunpack.c.l.b16 %v1405
        %v1410 = vunpack.c.l.b16 %v1406
        %v1411 = vpack.c.b16 %v1410, %v1409
        %s1413 = scalar_lea.vmem %s177, 96 [#allocation2]
        %1414 = vst.msk [vmem:[%s1413] sm:$0xff] %vm439, %v1411
        %1417 = vrot.lane.b32.xlu0 %v302, 127
        %v1418 = vpop.permute.xlu0 %1417
        %1419 = vrot.lane.b32.xlu0 %v303, 127
        %v1420 = vpop.permute.xlu0 %1419
        %v1421 = vsel %vm324, %v1418, %v1420
        %1424 = vrot.lane.b32.xlu0 %v302, 126
        %v1425 = vpop.permute.xlu0 %1424
        %1426 = vrot.lane.b32.xlu0 %v303, 126
        %v1427 = vpop.permute.xlu0 %1426
        %v1428 = vsel %vm332, %v1425, %v1427
        %v1431 = vpack.c.bf16 %v295, %v1266
        %v1432 = vpack.c.bf16 %v296, %v1265
        %v1433 = vpack.c.bf16 %v1347, %v1340
        %v1434 = vpack.c.bf16 %v1346, %v1339
        %v1435 = vpack.c.bf16 %v1421, %v302
        %v1436 = vpack.c.bf16 %v1420, %v303
        %v1437 = vpack.c.bf16 %v1428, %v1428
        %v1438 = vpack.c.bf16 %v1427, %v1427
        %v1440 = vsel %vm382, %v1437, 0
        %v1443 = vsel %vm382, %v1438, 0
        %1445 = vmatprep.subr.bf16.mxu0 0
        %1446 = vmatpush1.bf16.msra.mxu0 0
        %1447 = vmatprep.subr.bf16.mxu0 0
        %1448 = vmatpush1.bf16.msra.mxu0 0
        %1449 = vmatprep.subr.bf16.mxu0 0
        %1450 = vmatpush1.bf16.msra.mxu0 0
        %1451 = vmatprep.subr.bf16.mxu0 %v1443
        %1452 = vmatpush1.bf16.msra.mxu0 %v1440
        %1453 = vmatprep.subr.bf16.mxu0 %v1436
        %1454 = vmatpush1.bf16.msra.mxu0 %v1435
        %1455 = vmatprep.subr.bf16.mxu0 %v1434
        %1456 = vmatpush1.bf16.msra.mxu0 %v1433
        %1457 = vmatprep.subr.bf16.mxu0 %v1432
        %1458 = vmatpush1.bf16.msra.mxu0 %v1431
        %1459 = vmatprep.subr.bf16.mxu0 %v1274
        %1460 = vmatpush1.bf16.msra.mxu0 %v1273
        %1461 = vmatprep.subr.bf16.mxu0 0
        %1462 = vmatpush2.bf16.msra.mxu0 0
        %1463 = vmatprep.subr.bf16.mxu0 0
        %1464 = vmatpush2.bf16.msra.mxu0 0
        %1465 = vmatprep.subr.bf16.mxu0 0
        %1466 = vmatpush2.bf16.msra.mxu0 0
        %1467 = vmatprep.subr.bf16.mxu0 0
        %1468 = vmatpush2.bf16.msra.mxu0 0
        %1469 = vmatprep.subr.bf16.mxu0 0
        %1470 = vmatpush2.bf16.msra.mxu0 0
        %1471 = vmatprep.subr.bf16.mxu0 0
        %1472 = vmatpush2.bf16.msra.mxu0 0
        %1473 = vmatprep.subr.bf16.mxu0 0
        %1474 = vmatpush2.bf16.msra.mxu0 0
        %1475 = vmatprep.subr.bf16.mxu0 0
        %1476 = vmatpush2.bf16.msra.mxu0 0
        %1477 = vmatprep.mubr.bf16.mxu0 0
        %1478 = vmatmul.mubr.bf16.gmra.mxu0 %v380
        %v1479 = vpop.f32.mrf.mxu0
        %v1480 = vadd.f32 %v191, %v1479
        %v1481 = vpop.f32.mrf.mxu0
        %v1482 = vadd.f32 %v191, %v1481
        %v1483 = vpop.f32.mrf.mxu0
        %v1484 = vpop.f32.mrf.mxu0
        %1485 = vdwg.mxu0
        %v1486 = vpack.c.bf16 %v1480, %v1480
        %v1487 = vpack.c.bf16 %v1482, %v1482
        %v1490 = vunpack.c.l.b16 %v1486
        %v1491 = vunpack.c.l.b16 %v1487
        %v1492 = vpack.c.b16 %v1491, %v1490
        %s1494 = scalar_lea.vmem %s177, 104 [#allocation2]
        %1495 = vst.msk [vmem:[%s1494] sm:$0xff] %vm439, %v1492
        %1498 = vrot.lane.b32.xlu0 %v309, 127
        %v1499 = vpop.permute.xlu0 %1498
        %1500 = vrot.lane.b32.xlu0 %v310, 127
        %v1501 = vpop.permute.xlu0 %1500
        %v1502 = vsel %vm324, %v1499, %v1501
        %1505 = vrot.lane.b32.xlu0 %v309, 126
        %v1506 = vpop.permute.xlu0 %1505
        %1507 = vrot.lane.b32.xlu0 %v310, 126
        %v1508 = vpop.permute.xlu0 %1507
        %v1509 = vsel %vm332, %v1506, %v1508
        %v1512 = vpack.c.bf16 %v302, %v1347
        %v1513 = vpack.c.bf16 %v303, %v1346
        %v1514 = vpack.c.bf16 %v1428, %v1421
        %v1515 = vpack.c.bf16 %v1427, %v1420
        %v1516 = vpack.c.bf16 %v1502, %v309
        %v1517 = vpack.c.bf16 %v1501, %v310
        %v1518 = vpack.c.bf16 %v1509, %v1509
        %v1519 = vpack.c.bf16 %v1508, %v1508
        %v1521 = vsel %vm382, %v1518, 0
        %v1524 = vsel %vm382, %v1519, 0
        %1526 = vmatprep.subr.bf16.mxu0 0
        %1527 = vmatpush1.bf16.msra.mxu0 0
        %1528 = vmatprep.subr.bf16.mxu0 0
        %1529 = vmatpush1.bf16.msra.mxu0 0
        %1530 = vmatprep.subr.bf16.mxu0 0
        %1531 = vmatpush1.bf16.msra.mxu0 0
        %1532 = vmatprep.subr.bf16.mxu0 %v1524
        %1533 = vmatpush1.bf16.msra.mxu0 %v1521
        %1534 = vmatprep.subr.bf16.mxu0 %v1517
        %1535 = vmatpush1.bf16.msra.mxu0 %v1516
        %1536 = vmatprep.subr.bf16.mxu0 %v1515
        %1537 = vmatpush1.bf16.msra.mxu0 %v1514
        %1538 = vmatprep.subr.bf16.mxu0 %v1513
        %1539 = vmatpush1.bf16.msra.mxu0 %v1512
        %1540 = vmatprep.subr.bf16.mxu0 %v1355
        %1541 = vmatpush1.bf16.msra.mxu0 %v1354
        %1542 = vmatprep.subr.bf16.mxu0 0
        %1543 = vmatpush2.bf16.msra.mxu0 0
        %1544 = vmatprep.subr.bf16.mxu0 0
        %1545 = vmatpush2.bf16.msra.mxu0 0
        %1546 = vmatprep.subr.bf16.mxu0 0
        %1547 = vmatpush2.bf16.msra.mxu0 0
        %1548 = vmatprep.subr.bf16.mxu0 0
        %1549 = vmatpush2.bf16.msra.mxu0 0
        %1550 = vmatprep.subr.bf16.mxu0 0
        %1551 = vmatpush2.bf16.msra.mxu0 0
        %1552 = vmatprep.subr.bf16.mxu0 0
        %1553 = vmatpush2.bf16.msra.mxu0 0
        %1554 = vmatprep.subr.bf16.mxu0 0
        %1555 = vmatpush2.bf16.msra.mxu0 0
        %1556 = vmatprep.subr.bf16.mxu0 0
        %1557 = vmatpush2.bf16.msra.mxu0 0
        %1558 = vmatprep.mubr.bf16.mxu0 0
        %1559 = vmatmul.mubr.bf16.gmra.mxu0 %v380
        %v1560 = vpop.f32.mrf.mxu0
        %v1561 = vadd.f32 %v191, %v1560
        %v1562 = vpop.f32.mrf.mxu0
        %v1563 = vadd.f32 %v191, %v1562
        %v1564 = vpop.f32.mrf.mxu0
        %v1565 = vpop.f32.mrf.mxu0
        %1566 = vdwg.mxu0
        %v1567 = vpack.c.bf16 %v1561, %v1561
        %v1568 = vpack.c.bf16 %v1563, %v1563
        %v1571 = vunpack.c.l.b16 %v1567
        %v1572 = vunpack.c.l.b16 %v1568
        %v1573 = vpack.c.b16 %v1572, %v1571
        %s1575 = scalar_lea.vmem %s177, 112 [#allocation2]
        %1576 = vst.msk [vmem:[%s1575] sm:$0xff] %vm439, %v1573
        %1579 = vrot.lane.b32.xlu0 %v316, 127
        %v1580 = vpop.permute.xlu0 %1579
        %1581 = vrot.lane.b32.xlu0 %v317, 127
        %v1582 = vpop.permute.xlu0 %1581
        %v1583 = vsel %vm324, %v1580, %v1582
        %1586 = vrot.lane.b32.xlu0 %v316, 126
        %v1587 = vpop.permute.xlu0 %1586
        %1588 = vrot.lane.b32.xlu0 %v317, 126
        %v1589 = vpop.permute.xlu0 %1588
        %v1590 = vsel %vm332, %v1587, %v1589
        %v1593 = vpack.c.bf16 %v309, %v1428
        %v1594 = vpack.c.bf16 %v310, %v1427
        %v1595 = vpack.c.bf16 %v1509, %v1502
        %v1596 = vpack.c.bf16 %v1508, %v1501
        %v1597 = vpack.c.bf16 %v1583, %v316
        %v1598 = vpack.c.bf16 %v1582, %v317
        %v1599 = vpack.c.bf16 %v1590, %v1590
        %v1600 = vpack.c.bf16 %v1589, %v1589
        %v1602 = vsel %vm382, %v1599, 0
        %v1605 = vsel %vm382, %v1600, 0
        %1607 = vmatprep.subr.bf16.mxu0 0
        %1608 = vmatpush1.bf16.msra.mxu0 0
        %1609 = vmatprep.subr.bf16.mxu0 0
        %1610 = vmatpush1.bf16.msra.mxu0 0
        %1611 = vmatprep.subr.bf16.mxu0 0
        %1612 = vmatpush1.bf16.msra.mxu0 0
        %1613 = vmatprep.subr.bf16.mxu0 %v1605
        %1614 = vmatpush1.bf16.msra.mxu0 %v1602
        %1615 = vmatprep.subr.bf16.mxu0 %v1598
        %1616 = vmatpush1.bf16.msra.mxu0 %v1597
        %1617 = vmatprep.subr.bf16.mxu0 %v1596
        %1618 = vmatpush1.bf16.msra.mxu0 %v1595
        %1619 = vmatprep.subr.bf16.mxu0 %v1594
        %1620 = vmatpush1.bf16.msra.mxu0 %v1593
        %1621 = vmatprep.subr.bf16.mxu0 %v1436
        %1622 = vmatpush1.bf16.msra.mxu0 %v1435
        %1623 = vmatprep.subr.bf16.mxu0 0
        %1624 = vmatpush2.bf16.msra.mxu0 0
        %1625 = vmatprep.subr.bf16.mxu0 0
        %1626 = vmatpush2.bf16.msra.mxu0 0
        %1627 = vmatprep.subr.bf16.mxu0 0
        %1628 = vmatpush2.bf16.msra.mxu0 0
        %1629 = vmatprep.subr.bf16.mxu0 0
        %1630 = vmatpush2.bf16.msra.mxu0 0
        %1631 = vmatprep.subr.bf16.mxu0 0
        %1632 = vmatpush2.bf16.msra.mxu0 0
        %1633 = vmatprep.subr.bf16.mxu0 0
        %1634 = vmatpush2.bf16.msra.mxu0 0
        %1635 = vmatprep.subr.bf16.mxu0 0
        %1636 = vmatpush2.bf16.msra.mxu0 0
        %1637 = vmatprep.subr.bf16.mxu0 0
        %1638 = vmatpush2.bf16.msra.mxu0 0
        %1639 = vmatprep.mubr.bf16.mxu0 0
        %1640 = vmatmul.mubr.bf16.gmra.mxu0 %v380
        %v1641 = vpop.f32.mrf.mxu0
        %v1642 = vadd.f32 %v191, %v1641
        %v1643 = vpop.f32.mrf.mxu0
        %v1644 = vadd.f32 %v191, %v1643
        %v1645 = vpop.f32.mrf.mxu0
        %v1646 = vpop.f32.mrf.mxu0
        %1647 = vdwg.mxu0
        %v1648 = vpack.c.bf16 %v1642, %v1642
        %v1649 = vpack.c.bf16 %v1644, %v1644
        %v1652 = vunpack.c.l.b16 %v1648
        %v1653 = vunpack.c.l.b16 %v1649
        %v1654 = vpack.c.b16 %v1653, %v1652
        %s1656 = scalar_lea.vmem %s177, 120 [#allocation2]
        %1657 = vst.msk [vmem:[%s1656] sm:$0xff] %vm439, %v1654
        %s1658 = sand.u32 %s107, 1
        %s1659 = scalar_lea.sflag [#allocation3], %s1658
        %s1660 = sand.u32 %s107, 1
        %s1661 = smul.addr %s1660, 128
        %s1662 = scalar_lea.vmem [#allocation2], %s1661
        // Predicated region
        $region33: #{conv3x3.1} parent=31 // pred_check
          %p1663 = pneg %p117
        $region34: #{conv3x3.1} parent=31 // pred_check_branch
          %1665 = sbr.rel (%p1663) target = $region36
        $region35: #{conv3x3.1} parent=31 // pred_region
          %s1666 = smul.u32 16, %s22
          %s1668 = ssub.s32 2048, 2048
          %1669 = vsyncadd %s1659, %s1668
          %s1670 = smul.addr %s1666, 2
          %s1671 = smul.addr %s21, 448
          %s1672 = sadd.s32 %s1670, %s1671
          %s1673 = smul.addr %s1672, 64
          %s1674 = scalar_lea.hbm %s3, %s1673
          %s1675 = sshll.u32 %s1662, 4
          %s1676 = int_to_ptr.vmem [resolvable:$true] %s1675
          %1681 = dma.vmem_to_hbm [thread:$0]  %s1676, 2048, %s1674, %s1659, 128, 128, 8
        $region36: #{conv3x3.1} parent=31 // pred_fallthru
          _
      $region32: #{conv3x3.1} parent=5 // pred_fallthru
        _
      %p1682 = scmp.le.s32.totalorder 2, %s12
      // Predicated region
      $region37: #{conv3x3.1} parent=5 // pred_check
        %p1683 = pneg %p1682
      $region38: #{conv3x3.1} parent=5 // pred_check_branch
        %1685 = sbr.rel (%p1683) target = $region40
      $region39: #{conv3x3.1} parent=5 // pred_region
        %s1686 = ssub.s32 %s12, 2
        // Predicated region
        $region41: #{conv3x3.1} parent=39 // pred_check
          %p1687 = pneg %p123
        $region42: #{conv3x3.1} parent=39 // pred_check_branch
          %1689 = sbr.rel (%p1687) target = $region44
        $region43: #{conv3x3.1} parent=39 // pred_region
          %s1690 = sand.u32 %s108, 1
          %s1691 = scalar_lea.sflag [#allocation3], %s1690
          %s1692 = sand.u32 %s108, 1
          %s1693 = smul.addr %s1692, 128
          %s1694 = scalar_lea.vmem [#allocation2], %s1693
          %1695 = dma.done %s1691, 2048
        $region44: #{conv3x3.1} parent=39 // pred_fallthru
          _
      $region40: #{conv3x3.1} parent=5 // pred_fallthru
        _
    $region6: #{conv3x3.1} parent=1 // loop_footer
      %s16 = sadd.s32 1, %s12
    $region7: #{conv3x3.1} parent=1 // loop_footer_branch
      %11 = sbr.rel target = $region3
    $region8: #{conv3x3.1} parent=1 // loop_exit
      _
    %1696 = vsyncpa [#allocation3], 1
    %s1697 = scalar_lea.sflag [#allocation3], 1
    %1698 = vsyncpa %s1697, 1

</llo_original>
